<compile_context>
chip_gen: v7x
topology: tpu7x:2x2x1
jax: 0.10.0
libtpu: 0.0.40
codegen_flags: <defaults>
</compile_context>

<pallas_src>
import jax
import jax.numpy as jnp
from jax.experimental import pallas as pl
from jax.experimental.pallas import tpu as pltpu

RNN_LAYERS = 2
WORD_DIM = 32          # hidden size (output_dim)
Z_DIM = WORD_DIM       # must equal WORD_DIM for the autoregressive feedback
SENTENCE_LEN = 8
BATCH = 2              # free up to 8 (sublane packing); kernel is latency-bound

assert Z_DIM == WORD_DIM, "autoregressive feedback requires z_dim == output_dim"


def _lstm_gen_kernel(z_ref, wih0_ref, whh0_ref, b0_ref,
                     wih1_ref, whh1_ref, b1_ref, out_ref):
    """SENTENCE_LEN autoregressive steps of a 2-layer LSTM, fully in VMEM.

    Gate order follows PyTorch nn.LSTM: [i, f, g, o].
    w*_ref: (in_dim, 4H); the i/f/o columns are pre-scaled by 0.5 so one tanh
    pass gives all four gate nonlinearities (sigmoid via tanh identity).
    b*_ref: (1, 4H) = 0.5-prescaled (b_ih + b_hh).
    out_ref: (B, SENTENCE_LEN * H), time-major blocks along the lane axis.
    """
    B = z_ref.shape[0]
    H = WORD_DIM

    x = z_ref[...]
    wih0 = wih0_ref[...]
    whh0 = whh0_ref[...]
    wih1 = wih1_ref[...]
    whh1 = whh1_ref[...]
    # Hoist the bias broadcasts out of the unrolled time loop.
    b0 = jnp.broadcast_to(b0_ref[...], (B, 4 * H))
    b1 = jnp.broadcast_to(b1_ref[...], (B, 4 * H))

    def gates_to_hc(gates, c, first):
        # One EUP pass: t = tanh(gates).  Because the i/f/o columns were
        # pre-scaled by 0.5, sigmoid(raw) == 0.5 * t + 0.5 exactly.
        t = jnp.tanh(gates)
        s = 0.5 * t + 0.5
        i = s[:, 0 * H:1 * H]
        g = t[:, 2 * H:3 * H]
        o = s[:, 3 * H:4 * H]
        if first:
            c_new = i * g                         # f * c == 0 at t == 0
        else:
            f = s[:, 1 * H:2 * H]
            c_new = f * c + i * g
        h_new = o * jnp.tanh(c_new)
        return h_new, c_new

    def cell(x_in, h, c, wih, whh, b, first):
        # Two small MXU pushes instead of a lane-concat + one fused push;
        # the h@W_hh term can be issued as soon as the previous h is ready.
        gates = jnp.dot(x_in, wih, preferred_element_type=jnp.float32) + b
        if not first:
            gates = gates + jnp.dot(h, whh, preferred_element_type=jnp.float32)
        return gates_to_hc(gates, c, first)

    # TODO(synk): if profiling shows the MXU leg still binds, stage W_ih/W_hh
    # once via pltpu.matmul_push_rhs / matmul_acc_lhs / matmul_pop instead of
    # re-pushing the RHS every cell (kept off for compile robustness with f32).

    h0 = c0 = h1 = c1 = None
    outs = []
    # SENTENCE_LEN is small and static -> unrolled Python loop; the chain is
    # inherently serial (x = h1 feedback), so no layer skewing is possible.
    for t in range(SENTENCE_LEN):
        first = (t == 0)                          # peeled: h/c are zero
        h0, c0 = cell(x, h0, c0, wih0, whh0, b0, first)
        h1, c1 = cell(h0, h1, c1, wih1, whh1, b1, first)
        outs.append(h1)
        x = h1                                    # autoregressive feedback

    # One lane-dense (B, T*H) store after the loop instead of 8 masked
    # (B, H) partial stores on the critical path.
    out_ref[...] = jnp.concatenate(outs, axis=-1).astype(out_ref.dtype)


def generator_forward(z, kparams):
    """z: (B, Z_DIM) uniform noise.  Returns (B, 1, SENTENCE_LEN, WORD_DIM)."""
    wih0, whh0, b0, wih1, whh1, b1 = kparams
    B = z.shape[0]
    vmem = pl.BlockSpec(memory_space=pltpu.MemorySpace.VMEM)
    out = pl.pallas_call(
        _lstm_gen_kernel,
        out_shape=jax.ShapeDtypeStruct((B, SENTENCE_LEN * WORD_DIM),
                                       jnp.float32),
        in_specs=[vmem] * 7,
        out_specs=vmem,
    )(z, wih0, whh0, b0, wih1, whh1, b1)
    # (B, T*H) -> (B, T, H) -> (B, 1, T, H): free metadata reshape, the kernel
    # already emits the time-major layout.
    return out.reshape(B, SENTENCE_LEN, WORD_DIM)[:, None, :, :]


def init_params(key):
    """PyTorch-style LSTM init, U(-1/sqrt(H), 1/sqrt(H)), stored as (in, 4H).

    Returns the *unscaled* reference parameters:
      (W_ih0, W_hh0, b0, W_ih1, W_hh1, b1) with b = b_ih + b_hh kept as (1,4H).
    """
    k = 1.0 / jnp.sqrt(jnp.float32(WORD_DIM))
    keys = jax.random.split(key, 8)

    def u(kk, shape):
        return jax.random.uniform(kk, shape, jnp.float32, minval=-k, maxval=k)

    wih0 = u(keys[0], (Z_DIM, 4 * WORD_DIM))
    whh0 = u(keys[1], (WORD_DIM, 4 * WORD_DIM))
    b0 = u(keys[2], (1, 4 * WORD_DIM)) + u(keys[3], (1, 4 * WORD_DIM))
    wih1 = u(keys[4], (WORD_DIM, 4 * WORD_DIM))
    whh1 = u(keys[5], (WORD_DIM, 4 * WORD_DIM))
    b1 = u(keys[6], (1, 4 * WORD_DIM)) + u(keys[7], (1, 4 * WORD_DIM))
    return (wih0, whh0, b0, wih1, whh1, b1)


def _prescale_sigmoid_cols(p):
    """Scale the i/f/o gate columns by 0.5 (exact: power-of-two multiply) so
    the kernel can compute sigmoid(x) = 0.5*tanh(x/2) + 0.5 with one tanh."""
    H = WORD_DIM
    scale = jnp.concatenate([
        jnp.full((1, H), 0.5, jnp.float32),    # i
        jnp.full((1, H), 0.5, jnp.float32),    # f
        jnp.ones((1, H), jnp.float32),         # g (true tanh gate, unscaled)
        jnp.full((1, H), 0.5, jnp.float32),    # o
    ], axis=-1)
    return p * scale


def prep_kernel_params(params):
    return tuple(_prescale_sigmoid_cols(p) for p in params)


def reference_forward(z, params):
    """Pure-JAX reference with PyTorch LSTM semantics (exact-precision dots)."""
    wih0, whh0, b0, wih1, whh1, b1 = params
    B = z.shape[0]
    H = WORD_DIM
    hi = jax.lax.Precision.HIGHEST

    def cell(x_in, h, c, wih, whh, b):
        g = (jnp.dot(x_in, wih, precision=hi)
             + jnp.dot(h, whh, precision=hi) + b)
        i = jax.nn.sigmoid(g[:, 0 * H:1 * H])
        f = jax.nn.sigmoid(g[:, 1 * H:2 * H])
        gg = jnp.tanh(g[:, 2 * H:3 * H])
        o = jax.nn.sigmoid(g[:, 3 * H:4 * H])
        c_new = f * c + i * gg
        return o * jnp.tanh(c_new), c_new

    x = z
    h0 = c0 = h1 = c1 = jnp.zeros((B, H), jnp.float32)
    outs = []
    for _ in range(SENTENCE_LEN):
        h0, c0 = cell(x, h0, c0, wih0, whh0, b0)
        h1, c1 = cell(h0, h1, c1, wih1, whh1, b1)
        outs.append(h1)
        x = h1
    return jnp.stack(outs, axis=1)[:, None, :, :]


if __name__ == "__main__":
    key = jax.random.PRNGKey(0)
    k_param, k_z = jax.random.split(key)
    params = init_params(k_param)
    kparams = prep_kernel_params(params)

    # z = torch.rand(batch, 1, z_dim) -> uniform [0, 1); seq dim squeezed.
    z = jax.random.uniform(k_z, (BATCH, Z_DIM), jnp.float32)

    # jit the wrapper so weights stay resident and launch overhead is fused.
    fwd = jax.jit(generator_forward)
    out = jax.block_until_ready(fwd(z, kparams))

    assert out.shape == (BATCH, 1, SENTENCE_LEN, WORD_DIM), out.shape

    ref = reference_forward(z, params)
    max_err = float(jnp.max(jnp.abs(out - ref)))
    assert jnp.allclose(out, ref, atol=1e-5, rtol=1e-5), max_err

    print("KERNEL_OK")
</pallas_src>

<mosaic_0001>
module attributes {stable_mosaic.version = 11 : i64} {
  func.func @_lstm_gen_kernel(%arg0: memref<2x32xf32, #tpu.memory_space<vmem>>, %arg1: memref<32x128xf32, #tpu.memory_space<vmem>>, %arg2: memref<32x128xf32, #tpu.memory_space<vmem>>, %arg3: memref<1x128xf32, #tpu.memory_space<vmem>>, %arg4: memref<32x128xf32, #tpu.memory_space<vmem>>, %arg5: memref<32x128xf32, #tpu.memory_space<vmem>>, %arg6: memref<1x128xf32, #tpu.memory_space<vmem>>, %arg7: memref<2x256xf32, #tpu.memory_space<vmem>>) attributes {dimension_semantics = [], scalar_prefetch = 0 : i64, scratch_operands = 0 : i64, tpu.core_type = #tpu.core_type<tc>} {
    %c0 = arith.constant 0 : index
    %c0_0 = arith.constant 0 : index
    %0 = vector.load %arg0[%c0, %c0_0] : memref<2x32xf32, #tpu.memory_space<vmem>>, vector<2x32xf32>
    %c0_1 = arith.constant 0 : index
    %c0_2 = arith.constant 0 : index
    %1 = vector.load %arg1[%c0_1, %c0_2] : memref<32x128xf32, #tpu.memory_space<vmem>>, vector<32x128xf32>
    %c0_3 = arith.constant 0 : index
    %c0_4 = arith.constant 0 : index
    %2 = vector.load %arg2[%c0_3, %c0_4] : memref<32x128xf32, #tpu.memory_space<vmem>>, vector<32x128xf32>
    %c0_5 = arith.constant 0 : index
    %c0_6 = arith.constant 0 : index
    %3 = vector.load %arg4[%c0_5, %c0_6] : memref<32x128xf32, #tpu.memory_space<vmem>>, vector<32x128xf32>
    %c0_7 = arith.constant 0 : index
    %c0_8 = arith.constant 0 : index
    %4 = vector.load %arg5[%c0_7, %c0_8] : memref<32x128xf32, #tpu.memory_space<vmem>>, vector<32x128xf32>
    %c0_9 = arith.constant 0 : index
    %c0_10 = arith.constant 0 : index
    %5 = vector.load %arg3[%c0_9, %c0_10] : memref<1x128xf32, #tpu.memory_space<vmem>>, vector<1x128xf32>
    %6 = vector.shape_cast %5 : vector<1x128xf32> to vector<1x128xf32>
    %7 = vector.broadcast %6 : vector<1x128xf32> to vector<2x128xf32>
    %c0_11 = arith.constant 0 : index
    %c0_12 = arith.constant 0 : index
    %8 = vector.load %arg6[%c0_11, %c0_12] : memref<1x128xf32, #tpu.memory_space<vmem>>, vector<1x128xf32>
    %9 = vector.shape_cast %8 : vector<1x128xf32> to vector<1x128xf32>
    %10 = vector.broadcast %9 : vector<1x128xf32> to vector<2x128xf32>
    %cst = arith.constant dense<0.000000e+00> : vector<2x128xf32>
    %11 = tpu.matmul %0, %1, %cst {dimension_numbers = #tpu.dot_dimension_numbers<[1], [0], [0], [1], [0, 0, 1, 1], [], []>} : vector<2x32xf32>, vector<32x128xf32>, vector<2x128xf32> -> vector<2x128xf32>
    %12 = arith.addf %11, %7 : vector<2x128xf32>
    %13 = math.tanh %12 : vector<2x128xf32>
    %cst_13 = arith.constant 5.000000e-01 : f32
    %14 = vector.broadcast %cst_13 : f32 to vector<2x128xf32>
    %15 = arith.mulf %14, %13 : vector<2x128xf32>
    %cst_14 = arith.constant 5.000000e-01 : f32
    %16 = vector.broadcast %cst_14 : f32 to vector<2x128xf32>
    %17 = arith.addf %15, %16 : vector<2x128xf32>
    %18 = vector.extract_strided_slice %17 {offsets = [0, 0], sizes = [2, 32], strides = [1, 1]} : vector<2x128xf32> to vector<2x32xf32>
    %19 = vector.extract_strided_slice %13 {offsets = [0, 64], sizes = [2, 32], strides = [1, 1]} : vector<2x128xf32> to vector<2x32xf32>
    %20 = vector.extract_strided_slice %17 {offsets = [0, 96], sizes = [2, 32], strides = [1, 1]} : vector<2x128xf32> to vector<2x32xf32>
    %21 = arith.mulf %18, %19 : vector<2x32xf32>
    %22 = math.tanh %21 : vector<2x32xf32>
    %23 = arith.mulf %20, %22 : vector<2x32xf32>
    %cst_15 = arith.constant dense<0.000000e+00> : vector<2x128xf32>
    %24 = tpu.matmul %23, %3, %cst_15 {dimension_numbers = #tpu.dot_dimension_numbers<[1], [0], [0], [1], [0, 0, 1, 1], [], []>} : vector<2x32xf32>, vector<32x128xf32>, vector<2x128xf32> -> vector<2x128xf32>
    %25 = arith.addf %24, %10 : vector<2x128xf32>
    %26 = math.tanh %25 : vector<2x128xf32>
    %cst_16 = arith.constant 5.000000e-01 : f32
    %27 = vector.broadcast %cst_16 : f32 to vector<2x128xf32>
    %28 = arith.mulf %27, %26 : vector<2x128xf32>
    %cst_17 = arith.constant 5.000000e-01 : f32
    %29 = vector.broadcast %cst_17 : f32 to vector<2x128xf32>
    %30 = arith.addf %28, %29 : vector<2x128xf32>
    %31 = vector.extract_strided_slice %30 {offsets = [0, 0], sizes = [2, 32], strides = [1, 1]} : vector<2x128xf32> to vector<2x32xf32>
    %32 = vector.extract_strided_slice %26 {offsets = [0, 64], sizes = [2, 32], strides = [1, 1]} : vector<2x128xf32> to vector<2x32xf32>
    %33 = vector.extract_strided_slice %30 {offsets = [0, 96], sizes = [2, 32], strides = [1, 1]} : vector<2x128xf32> to vector<2x32xf32>
    %34 = arith.mulf %31, %32 : vector<2x32xf32>
    %35 = math.tanh %34 : vector<2x32xf32>
    %36 = arith.mulf %33, %35 : vector<2x32xf32>
    %cst_18 = arith.constant dense<0.000000e+00> : vector<2x128xf32>
    %37 = tpu.matmul %36, %1, %cst_18 {dimension_numbers = #tpu.dot_dimension_numbers<[1], [0], [0], [1], [0, 0, 1, 1], [], []>} : vector<2x32xf32>, vector<32x128xf32>, vector<2x128xf32> -> vector<2x128xf32>
    %38 = arith.addf %37, %7 : vector<2x128xf32>
    %cst_19 = arith.constant dense<0.000000e+00> : vector<2x128xf32>
    %39 = tpu.matmul %23, %2, %cst_19 {dimension_numbers = #tpu.dot_dimension_numbers<[1], [0], [0], [1], [0, 0, 1, 1], [], []>} : vector<2x32xf32>, vector<32x128xf32>, vector<2x128xf32> -> vector<2x128xf32>
    %40 = arith.addf %38, %39 : vector<2x128xf32>
    %41 = math.tanh %40 : vector<2x128xf32>
    %cst_20 = arith.constant 5.000000e-01 : f32
    %42 = vector.broadcast %cst_20 : f32 to vector<2x128xf32>
    %43 = arith.mulf %42, %41 : vector<2x128xf32>
    %cst_21 = arith.constant 5.000000e-01 : f32
    %44 = vector.broadcast %cst_21 : f32 to vector<2x128xf32>
    %45 = arith.addf %43, %44 : vector<2x128xf32>
    %46 = vector.extract_strided_slice %45 {offsets = [0, 0], sizes = [2, 32], strides = [1, 1]} : vector<2x128xf32> to vector<2x32xf32>
    %47 = vector.extract_strided_slice %41 {offsets = [0, 64], sizes = [2, 32], strides = [1, 1]} : vector<2x128xf32> to vector<2x32xf32>
    %48 = vector.extract_strided_slice %45 {offsets = [0, 96], sizes = [2, 32], strides = [1, 1]} : vector<2x128xf32> to vector<2x32xf32>
    %49 = vector.extract_strided_slice %45 {offsets = [0, 32], sizes = [2, 32], strides = [1, 1]} : vector<2x128xf32> to vector<2x32xf32>
    %50 = arith.mulf %49, %21 : vector<2x32xf32>
    %51 = arith.mulf %46, %47 : vector<2x32xf32>
    %52 = arith.addf %50, %51 : vector<2x32xf32>
    %53 = math.tanh %52 : vector<2x32xf32>
    %54 = arith.mulf %48, %53 : vector<2x32xf32>
    %cst_22 = arith.constant dense<0.000000e+00> : vector<2x128xf32>
    %55 = tpu.matmul %54, %3, %cst_22 {dimension_numbers = #tpu.dot_dimension_numbers<[1], [0], [0], [1], [0, 0, 1, 1], [], []>} : vector<2x32xf32>, vector<32x128xf32>, vector<2x128xf32> -> vector<2x128xf32>
    %56 = arith.addf %55, %10 : vector<2x128xf32>
    %cst_23 = arith.constant dense<0.000000e+00> : vector<2x128xf32>
    %57 = tpu.matmul %36, %4, %cst_23 {dimension_numbers = #tpu.dot_dimension_numbers<[1], [0], [0], [1], [0, 0, 1, 1], [], []>} : vector<2x32xf32>, vector<32x128xf32>, vector<2x128xf32> -> vector<2x128xf32>
    %58 = arith.addf %56, %57 : vector<2x128xf32>
    %59 = math.tanh %58 : vector<2x128xf32>
    %cst_24 = arith.constant 5.000000e-01 : f32
    %60 = vector.broadcast %cst_24 : f32 to vector<2x128xf32>
    %61 = arith.mulf %60, %59 : vector<2x128xf32>
    %cst_25 = arith.constant 5.000000e-01 : f32
    %62 = vector.broadcast %cst_25 : f32 to vector<2x128xf32>
    %63 = arith.addf %61, %62 : vector<2x128xf32>
    %64 = vector.extract_strided_slice %63 {offsets = [0, 0], sizes = [2, 32], strides = [1, 1]} : vector<2x128xf32> to vector<2x32xf32>
    %65 = vector.extract_strided_slice %59 {offsets = [0, 64], sizes = [2, 32], strides = [1, 1]} : vector<2x128xf32> to vector<2x32xf32>
    %66 = vector.extract_strided_slice %63 {offsets = [0, 96], sizes = [2, 32], strides = [1, 1]} : vector<2x128xf32> to vector<2x32xf32>
    %67 = vector.extract_strided_slice %63 {offsets = [0, 32], sizes = [2, 32], strides = [1, 1]} : vector<2x128xf32> to vector<2x32xf32>
    %68 = arith.mulf %67, %34 : vector<2x32xf32>
    %69 = arith.mulf %64, %65 : vector<2x32xf32>
    %70 = arith.addf %68, %69 : vector<2x32xf32>
    %71 = math.tanh %70 : vector<2x32xf32>
    %72 = arith.mulf %66, %71 : vector<2x32xf32>
    %cst_26 = arith.constant dense<0.000000e+00> : vector<2x128xf32>
    %73 = tpu.matmul %72, %1, %cst_26 {dimension_numbers = #tpu.dot_dimension_numbers<[1], [0], [0], [1], [0, 0, 1, 1], [], []>} : vector<2x32xf32>, vector<32x128xf32>, vector<2x128xf32> -> vector<2x128xf32>
    %74 = arith.addf %73, %7 : vector<2x128xf32>
    %cst_27 = arith.constant dense<0.000000e+00> : vector<2x128xf32>
    %75 = tpu.matmul %54, %2, %cst_27 {dimension_numbers = #tpu.dot_dimension_numbers<[1], [0], [0], [1], [0, 0, 1, 1], [], []>} : vector<2x32xf32>, vector<32x128xf32>, vector<2x128xf32> -> vector<2x128xf32>
    %76 = arith.addf %74, %75 : vector<2x128xf32>
    %77 = math.tanh %76 : vector<2x128xf32>
    %cst_28 = arith.constant 5.000000e-01 : f32
    %78 = vector.broadcast %cst_28 : f32 to vector<2x128xf32>
    %79 = arith.mulf %78, %77 : vector<2x128xf32>
    %cst_29 = arith.constant 5.000000e-01 : f32
    %80 = vector.broadcast %cst_29 : f32 to vector<2x128xf32>
    %81 = arith.addf %79, %80 : vector<2x128xf32>
    %82 = vector.extract_strided_slice %81 {offsets = [0, 0], sizes = [2, 32], strides = [1, 1]} : vector<2x128xf32> to vector<2x32xf32>
    %83 = vector.extract_strided_slice %77 {offsets = [0, 64], sizes = [2, 32], strides = [1, 1]} : vector<2x128xf32> to vector<2x32xf32>
    %84 = vector.extract_strided_slice %81 {offsets = [0, 96], sizes = [2, 32], strides = [1, 1]} : vector<2x128xf32> to vector<2x32xf32>
    %85 = vector.extract_strided_slice %81 {offsets = [0, 32], sizes = [2, 32], strides = [1, 1]} : vector<2x128xf32> to vector<2x32xf32>
    %86 = arith.mulf %85, %52 : vector<2x32xf32>
    %87 = arith.mulf %82, %83 : vector<2x32xf32>
    %88 = arith.addf %86, %87 : vector<2x32xf32>
    %89 = math.tanh %88 : vector<2x32xf32>
    %90 = arith.mulf %84, %89 : vector<2x32xf32>
    %cst_30 = arith.constant dense<0.000000e+00> : vector<2x128xf32>
    %91 = tpu.matmul %90, %3, %cst_30 {dimension_numbers = #tpu.dot_dimension_numbers<[1], [0], [0], [1], [0, 0, 1, 1], [], []>} : vector<2x32xf32>, vector<32x128xf32>, vector<2x128xf32> -> vector<2x128xf32>
    %92 = arith.addf %91, %10 : vector<2x128xf32>
    %cst_31 = arith.constant dense<0.000000e+00> : vector<2x128xf32>
    %93 = tpu.matmul %72, %4, %cst_31 {dimension_numbers = #tpu.dot_dimension_numbers<[1], [0], [0], [1], [0, 0, 1, 1], [], []>} : vector<2x32xf32>, vector<32x128xf32>, vector<2x128xf32> -> vector<2x128xf32>
    %94 = arith.addf %92, %93 : vector<2x128xf32>
    %95 = math.tanh %94 : vector<2x128xf32>
    %cst_32 = arith.constant 5.000000e-01 : f32
    %96 = vector.broadcast %cst_32 : f32 to vector<2x128xf32>
    %97 = arith.mulf %96, %95 : vector<2x128xf32>
    %cst_33 = arith.constant 5.000000e-01 : f32
    %98 = vector.broadcast %cst_33 : f32 to vector<2x128xf32>
    %99 = arith.addf %97, %98 : vector<2x128xf32>
    %100 = vector.extract_strided_slice %99 {offsets = [0, 0], sizes = [2, 32], strides = [1, 1]} : vector<2x128xf32> to vector<2x32xf32>
    %101 = vector.extract_strided_slice %95 {offsets = [0, 64], sizes = [2, 32], strides = [1, 1]} : vector<2x128xf32> to vector<2x32xf32>
    %102 = vector.extract_strided_slice %99 {offsets = [0, 96], sizes = [2, 32], strides = [1, 1]} : vector<2x128xf32> to vector<2x32xf32>
    %103 = vector.extract_strided_slice %99 {offsets = [0, 32], sizes = [2, 32], strides = [1, 1]} : vector<2x128xf32> to vector<2x32xf32>
    %104 = arith.mulf %103, %70 : vector<2x32xf32>
    %105 = arith.mulf %100, %101 : vector<2x32xf32>
    %106 = arith.addf %104, %105 : vector<2x32xf32>
    %107 = math.tanh %106 : vector<2x32xf32>
    %108 = arith.mulf %102, %107 : vector<2x32xf32>
    %cst_34 = arith.constant dense<0.000000e+00> : vector<2x128xf32>
    %109 = tpu.matmul %108, %1, %cst_34 {dimension_numbers = #tpu.dot_dimension_numbers<[1], [0], [0], [1], [0, 0, 1, 1], [], []>} : vector<2x32xf32>, vector<32x128xf32>, vector<2x128xf32> -> vector<2x128xf32>
    %110 = arith.addf %109, %7 : vector<2x128xf32>
    %cst_35 = arith.constant dense<0.000000e+00> : vector<2x128xf32>
    %111 = tpu.matmul %90, %2, %cst_35 {dimension_numbers = #tpu.dot_dimension_numbers<[1], [0], [0], [1], [0, 0, 1, 1], [], []>} : vector<2x32xf32>, vector<32x128xf32>, vector<2x128xf32> -> vector<2x128xf32>
    %112 = arith.addf %110, %111 : vector<2x128xf32>
    %113 = math.tanh %112 : vector<2x128xf32>
    %cst_36 = arith.constant 5.000000e-01 : f32
    %114 = vector.broadcast %cst_36 : f32 to vector<2x128xf32>
    %115 = arith.mulf %114, %113 : vector<2x128xf32>
    %cst_37 = arith.constant 5.000000e-01 : f32
    %116 = vector.broadcast %cst_37 : f32 to vector<2x128xf32>
    %117 = arith.addf %115, %116 : vector<2x128xf32>
    %118 = vector.extract_strided_slice %117 {offsets = [0, 0], sizes = [2, 32], strides = [1, 1]} : vector<2x128xf32> to vector<2x32xf32>
    %119 = vector.extract_strided_slice %113 {offsets = [0, 64], sizes = [2, 32], strides = [1, 1]} : vector<2x128xf32> to vector<2x32xf32>
    %120 = vector.extract_strided_slice %117 {offsets = [0, 96], sizes = [2, 32], strides = [1, 1]} : vector<2x128xf32> to vector<2x32xf32>
    %121 = vector.extract_strided_slice %117 {offsets = [0, 32], sizes = [2, 32], strides = [1, 1]} : vector<2x128xf32> to vector<2x32xf32>
    %122 = arith.mulf %121, %88 : vector<2x32xf32>
    %123 = arith.mulf %118, %119 : vector<2x32xf32>
    %124 = arith.addf %122, %123 : vector<2x32xf32>
    %125 = math.tanh %124 : vector<2x32xf32>
    %126 = arith.mulf %120, %125 : vector<2x32xf32>
    %cst_38 = arith.constant dense<0.000000e+00> : vector<2x128xf32>
    %127 = tpu.matmul %126, %3, %cst_38 {dimension_numbers = #tpu.dot_dimension_numbers<[1], [0], [0], [1], [0, 0, 1, 1], [], []>} : vector<2x32xf32>, vector<32x128xf32>, vector<2x128xf32> -> vector<2x128xf32>
    %128 = arith.addf %127, %10 : vector<2x128xf32>
    %cst_39 = arith.constant dense<0.000000e+00> : vector<2x128xf32>
    %129 = tpu.matmul %108, %4, %cst_39 {dimension_numbers = #tpu.dot_dimension_numbers<[1], [0], [0], [1], [0, 0, 1, 1], [], []>} : vector<2x32xf32>, vector<32x128xf32>, vector<2x128xf32> -> vector<2x128xf32>
    %130 = arith.addf %128, %129 : vector<2x128xf32>
    %131 = math.tanh %130 : vector<2x128xf32>
    %cst_40 = arith.constant 5.000000e-01 : f32
    %132 = vector.broadcast %cst_40 : f32 to vector<2x128xf32>
    %133 = arith.mulf %132, %131 : vector<2x128xf32>
    %cst_41 = arith.constant 5.000000e-01 : f32
    %134 = vector.broadcast %cst_41 : f32 to vector<2x128xf32>
    %135 = arith.addf %133, %134 : vector<2x128xf32>
    %136 = vector.extract_strided_slice %135 {offsets = [0, 0], sizes = [2, 32], strides = [1, 1]} : vector<2x128xf32> to vector<2x32xf32>
    %137 = vector.extract_strided_slice %131 {offsets = [0, 64], sizes = [2, 32], strides = [1, 1]} : vector<2x128xf32> to vector<2x32xf32>
    %138 = vector.extract_strided_slice %135 {offsets = [0, 96], sizes = [2, 32], strides = [1, 1]} : vector<2x128xf32> to vector<2x32xf32>
    %139 = vector.extract_strided_slice %135 {offsets = [0, 32], sizes = [2, 32], strides = [1, 1]} : vector<2x128xf32> to vector<2x32xf32>
    %140 = arith.mulf %139, %106 : vector<2x32xf32>
    %141 = arith.mulf %136, %137 : vector<2x32xf32>
    %142 = arith.addf %140, %141 : vector<2x32xf32>
    %143 = math.tanh %142 : vector<2x32xf32>
    %144 = arith.mulf %138, %143 : vector<2x32xf32>
    %cst_42 = arith.constant dense<0.000000e+00> : vector<2x128xf32>
    %145 = tpu.matmul %144, %1, %cst_42 {dimension_numbers = #tpu.dot_dimension_numbers<[1], [0], [0], [1], [0, 0, 1, 1], [], []>} : vector<2x32xf32>, vector<32x128xf32>, vector<2x128xf32> -> vector<2x128xf32>
    %146 = arith.addf %145, %7 : vector<2x128xf32>
    %cst_43 = arith.constant dense<0.000000e+00> : vector<2x128xf32>
    %147 = tpu.matmul %126, %2, %cst_43 {dimension_numbers = #tpu.dot_dimension_numbers<[1], [0], [0], [1], [0, 0, 1, 1], [], []>} : vector<2x32xf32>, vector<32x128xf32>, vector<2x128xf32> -> vector<2x128xf32>
    %148 = arith.addf %146, %147 : vector<2x128xf32>
    %149 = math.tanh %148 : vector<2x128xf32>
    %cst_44 = arith.constant 5.000000e-01 : f32
    %150 = vector.broadcast %cst_44 : f32 to vector<2x128xf32>
    %151 = arith.mulf %150, %149 : vector<2x128xf32>
    %cst_45 = arith.constant 5.000000e-01 : f32
    %152 = vector.broadcast %cst_45 : f32 to vector<2x128xf32>
    %153 = arith.addf %151, %152 : vector<2x128xf32>
    %154 = vector.extract_strided_slice %153 {offsets = [0, 0], sizes = [2, 32], strides = [1, 1]} : vector<2x128xf32> to vector<2x32xf32>
    %155 = vector.extract_strided_slice %149 {offsets = [0, 64], sizes = [2, 32], strides = [1, 1]} : vector<2x128xf32> to vector<2x32xf32>
    %156 = vector.extract_strided_slice %153 {offsets = [0, 96], sizes = [2, 32], strides = [1, 1]} : vector<2x128xf32> to vector<2x32xf32>
    %157 = vector.extract_strided_slice %153 {offsets = [0, 32], sizes = [2, 32], strides = [1, 1]} : vector<2x128xf32> to vector<2x32xf32>
    %158 = arith.mulf %157, %124 : vector<2x32xf32>
    %159 = arith.mulf %154, %155 : vector<2x32xf32>
    %160 = arith.addf %158, %159 : vector<2x32xf32>
    %161 = math.tanh %160 : vector<2x32xf32>
    %162 = arith.mulf %156, %161 : vector<2x32xf32>
    %cst_46 = arith.constant dense<0.000000e+00> : vector<2x128xf32>
    %163 = tpu.matmul %162, %3, %cst_46 {dimension_numbers = #tpu.dot_dimension_numbers<[1], [0], [0], [1], [0, 0, 1, 1], [], []>} : vector<2x32xf32>, vector<32x128xf32>, vector<2x128xf32> -> vector<2x128xf32>
    %164 = arith.addf %163, %10 : vector<2x128xf32>
    %cst_47 = arith.constant dense<0.000000e+00> : vector<2x128xf32>
    %165 = tpu.matmul %144, %4, %cst_47 {dimension_numbers = #tpu.dot_dimension_numbers<[1], [0], [0], [1], [0, 0, 1, 1], [], []>} : vector<2x32xf32>, vector<32x128xf32>, vector<2x128xf32> -> vector<2x128xf32>
    %166 = arith.addf %164, %165 : vector<2x128xf32>
    %167 = math.tanh %166 : vector<2x128xf32>
    %cst_48 = arith.constant 5.000000e-01 : f32
    %168 = vector.broadcast %cst_48 : f32 to vector<2x128xf32>
    %169 = arith.mulf %168, %167 : vector<2x128xf32>
    %cst_49 = arith.constant 5.000000e-01 : f32
    %170 = vector.broadcast %cst_49 : f32 to vector<2x128xf32>
    %171 = arith.addf %169, %170 : vector<2x128xf32>
    %172 = vector.extract_strided_slice %171 {offsets = [0, 0], sizes = [2, 32], strides = [1, 1]} : vector<2x128xf32> to vector<2x32xf32>
    %173 = vector.extract_strided_slice %167 {offsets = [0, 64], sizes = [2, 32], strides = [1, 1]} : vector<2x128xf32> to vector<2x32xf32>
    %174 = vector.extract_strided_slice %171 {offsets = [0, 96], sizes = [2, 32], strides = [1, 1]} : vector<2x128xf32> to vector<2x32xf32>
    %175 = vector.extract_strided_slice %171 {offsets = [0, 32], sizes = [2, 32], strides = [1, 1]} : vector<2x128xf32> to vector<2x32xf32>
    %176 = arith.mulf %175, %142 : vector<2x32xf32>
    %177 = arith.mulf %172, %173 : vector<2x32xf32>
    %178 = arith.addf %176, %177 : vector<2x32xf32>
    %179 = math.tanh %178 : vector<2x32xf32>
    %180 = arith.mulf %174, %179 : vector<2x32xf32>
    %cst_50 = arith.constant dense<0.000000e+00> : vector<2x128xf32>
    %181 = tpu.matmul %180, %1, %cst_50 {dimension_numbers = #tpu.dot_dimension_numbers<[1], [0], [0], [1], [0, 0, 1, 1], [], []>} : vector<2x32xf32>, vector<32x128xf32>, vector<2x128xf32> -> vector<2x128xf32>
    %182 = arith.addf %181, %7 : vector<2x128xf32>
    %cst_51 = arith.constant dense<0.000000e+00> : vector<2x128xf32>
    %183 = tpu.matmul %162, %2, %cst_51 {dimension_numbers = #tpu.dot_dimension_numbers<[1], [0], [0], [1], [0, 0, 1, 1], [], []>} : vector<2x32xf32>, vector<32x128xf32>, vector<2x128xf32> -> vector<2x128xf32>
    %184 = arith.addf %182, %183 : vector<2x128xf32>
    %185 = math.tanh %184 : vector<2x128xf32>
    %cst_52 = arith.constant 5.000000e-01 : f32
    %186 = vector.broadcast %cst_52 : f32 to vector<2x128xf32>
    %187 = arith.mulf %186, %185 : vector<2x128xf32>
    %cst_53 = arith.constant 5.000000e-01 : f32
    %188 = vector.broadcast %cst_53 : f32 to vector<2x128xf32>
    %189 = arith.addf %187, %188 : vector<2x128xf32>
    %190 = vector.extract_strided_slice %189 {offsets = [0, 0], sizes = [2, 32], strides = [1, 1]} : vector<2x128xf32> to vector<2x32xf32>
    %191 = vector.extract_strided_slice %185 {offsets = [0, 64], sizes = [2, 32], strides = [1, 1]} : vector<2x128xf32> to vector<2x32xf32>
    %192 = vector.extract_strided_slice %189 {offsets = [0, 96], sizes = [2, 32], strides = [1, 1]} : vector<2x128xf32> to vector<2x32xf32>
    %193 = vector.extract_strided_slice %189 {offsets = [0, 32], sizes = [2, 32], strides = [1, 1]} : vector<2x128xf32> to vector<2x32xf32>
    %194 = arith.mulf %193, %160 : vector<2x32xf32>
    %195 = arith.mulf %190, %191 : vector<2x32xf32>
    %196 = arith.addf %194, %195 : vector<2x32xf32>
    %197 = math.tanh %196 : vector<2x32xf32>
    %198 = arith.mulf %192, %197 : vector<2x32xf32>
    %cst_54 = arith.constant dense<0.000000e+00> : vector<2x128xf32>
    %199 = tpu.matmul %198, %3, %cst_54 {dimension_numbers = #tpu.dot_dimension_numbers<[1], [0], [0], [1], [0, 0, 1, 1], [], []>} : vector<2x32xf32>, vector<32x128xf32>, vector<2x128xf32> -> vector<2x128xf32>
    %200 = arith.addf %199, %10 : vector<2x128xf32>
    %cst_55 = arith.constant dense<0.000000e+00> : vector<2x128xf32>
    %201 = tpu.matmul %180, %4, %cst_55 {dimension_numbers = #tpu.dot_dimension_numbers<[1], [0], [0], [1], [0, 0, 1, 1], [], []>} : vector<2x32xf32>, vector<32x128xf32>, vector<2x128xf32> -> vector<2x128xf32>
    %202 = arith.addf %200, %201 : vector<2x128xf32>
    %203 = math.tanh %202 : vector<2x128xf32>
    %cst_56 = arith.constant 5.000000e-01 : f32
    %204 = vector.broadcast %cst_56 : f32 to vector<2x128xf32>
    %205 = arith.mulf %204, %203 : vector<2x128xf32>
    %cst_57 = arith.constant 5.000000e-01 : f32
    %206 = vector.broadcast %cst_57 : f32 to vector<2x128xf32>
    %207 = arith.addf %205, %206 : vector<2x128xf32>
    %208 = vector.extract_strided_slice %207 {offsets = [0, 0], sizes = [2, 32], strides = [1, 1]} : vector<2x128xf32> to vector<2x32xf32>
    %209 = vector.extract_strided_slice %203 {offsets = [0, 64], sizes = [2, 32], strides = [1, 1]} : vector<2x128xf32> to vector<2x32xf32>
    %210 = vector.extract_strided_slice %207 {offsets = [0, 96], sizes = [2, 32], strides = [1, 1]} : vector<2x128xf32> to vector<2x32xf32>
    %211 = vector.extract_strided_slice %207 {offsets = [0, 32], sizes = [2, 32], strides = [1, 1]} : vector<2x128xf32> to vector<2x32xf32>
    %212 = arith.mulf %211, %178 : vector<2x32xf32>
    %213 = arith.mulf %208, %209 : vector<2x32xf32>
    %214 = arith.addf %212, %213 : vector<2x32xf32>
    %215 = math.tanh %214 : vector<2x32xf32>
    %216 = arith.mulf %210, %215 : vector<2x32xf32>
    %cst_58 = arith.constant dense<0.000000e+00> : vector<2x128xf32>
    %217 = tpu.matmul %216, %1, %cst_58 {dimension_numbers = #tpu.dot_dimension_numbers<[1], [0], [0], [1], [0, 0, 1, 1], [], []>} : vector<2x32xf32>, vector<32x128xf32>, vector<2x128xf32> -> vector<2x128xf32>
    %218 = arith.addf %217, %7 : vector<2x128xf32>
    %cst_59 = arith.constant dense<0.000000e+00> : vector<2x128xf32>
    %219 = tpu.matmul %198, %2, %cst_59 {dimension_numbers = #tpu.dot_dimension_numbers<[1], [0], [0], [1], [0, 0, 1, 1], [], []>} : vector<2x32xf32>, vector<32x128xf32>, vector<2x128xf32> -> vector<2x128xf32>
    %220 = arith.addf %218, %219 : vector<2x128xf32>
    %221 = math.tanh %220 : vector<2x128xf32>
    %cst_60 = arith.constant 5.000000e-01 : f32
    %222 = vector.broadcast %cst_60 : f32 to vector<2x128xf32>
    %223 = arith.mulf %222, %221 : vector<2x128xf32>
    %cst_61 = arith.constant 5.000000e-01 : f32
    %224 = vector.broadcast %cst_61 : f32 to vector<2x128xf32>
    %225 = arith.addf %223, %224 : vector<2x128xf32>
    %226 = vector.extract_strided_slice %225 {offsets = [0, 0], sizes = [2, 32], strides = [1, 1]} : vector<2x128xf32> to vector<2x32xf32>
    %227 = vector.extract_strided_slice %221 {offsets = [0, 64], sizes = [2, 32], strides = [1, 1]} : vector<2x128xf32> to vector<2x32xf32>
    %228 = vector.extract_strided_slice %225 {offsets = [0, 96], sizes = [2, 32], strides = [1, 1]} : vector<2x128xf32> to vector<2x32xf32>
    %229 = vector.extract_strided_slice %225 {offsets = [0, 32], sizes = [2, 32], strides = [1, 1]} : vector<2x128xf32> to vector<2x32xf32>
    %230 = arith.mulf %229, %196 : vector<2x32xf32>
    %231 = arith.mulf %226, %227 : vector<2x32xf32>
    %232 = arith.addf %230, %231 : vector<2x32xf32>
    %233 = math.tanh %232 : vector<2x32xf32>
    %234 = arith.mulf %228, %233 : vector<2x32xf32>
    %cst_62 = arith.constant dense<0.000000e+00> : vector<2x128xf32>
    %235 = tpu.matmul %234, %3, %cst_62 {dimension_numbers = #tpu.dot_dimension_numbers<[1], [0], [0], [1], [0, 0, 1, 1], [], []>} : vector<2x32xf32>, vector<32x128xf32>, vector<2x128xf32> -> vector<2x128xf32>
    %236 = arith.addf %235, %10 : vector<2x128xf32>
    %cst_63 = arith.constant dense<0.000000e+00> : vector<2x128xf32>
    %237 = tpu.matmul %216, %4, %cst_63 {dimension_numbers = #tpu.dot_dimension_numbers<[1], [0], [0], [1], [0, 0, 1, 1], [], []>} : vector<2x32xf32>, vector<32x128xf32>, vector<2x128xf32> -> vector<2x128xf32>
    %238 = arith.addf %236, %237 : vector<2x128xf32>
    %239 = math.tanh %238 : vector<2x128xf32>
    %cst_64 = arith.constant 5.000000e-01 : f32
    %240 = vector.broadcast %cst_64 : f32 to vector<2x128xf32>
    %241 = arith.mulf %240, %239 : vector<2x128xf32>
    %cst_65 = arith.constant 5.000000e-01 : f32
    %242 = vector.broadcast %cst_65 : f32 to vector<2x128xf32>
    %243 = arith.addf %241, %242 : vector<2x128xf32>
    %244 = vector.extract_strided_slice %243 {offsets = [0, 0], sizes = [2, 32], strides = [1, 1]} : vector<2x128xf32> to vector<2x32xf32>
    %245 = vector.extract_strided_slice %239 {offsets = [0, 64], sizes = [2, 32], strides = [1, 1]} : vector<2x128xf32> to vector<2x32xf32>
    %246 = vector.extract_strided_slice %243 {offsets = [0, 96], sizes = [2, 32], strides = [1, 1]} : vector<2x128xf32> to vector<2x32xf32>
    %247 = vector.extract_strided_slice %243 {offsets = [0, 32], sizes = [2, 32], strides = [1, 1]} : vector<2x128xf32> to vector<2x32xf32>
    %248 = arith.mulf %247, %214 : vector<2x32xf32>
    %249 = arith.mulf %244, %245 : vector<2x32xf32>
    %250 = arith.addf %248, %249 : vector<2x32xf32>
    %251 = math.tanh %250 : vector<2x32xf32>
    %252 = arith.mulf %246, %251 : vector<2x32xf32>
    %cst_66 = arith.constant dense<0.000000e+00> : vector<2x128xf32>
    %253 = tpu.matmul %252, %1, %cst_66 {dimension_numbers = #tpu.dot_dimension_numbers<[1], [0], [0], [1], [0, 0, 1, 1], [], []>} : vector<2x32xf32>, vector<32x128xf32>, vector<2x128xf32> -> vector<2x128xf32>
    %254 = arith.addf %253, %7 : vector<2x128xf32>
    %cst_67 = arith.constant dense<0.000000e+00> : vector<2x128xf32>
    %255 = tpu.matmul %234, %2, %cst_67 {dimension_numbers = #tpu.dot_dimension_numbers<[1], [0], [0], [1], [0, 0, 1, 1], [], []>} : vector<2x32xf32>, vector<32x128xf32>, vector<2x128xf32> -> vector<2x128xf32>
    %256 = arith.addf %254, %255 : vector<2x128xf32>
    %257 = math.tanh %256 : vector<2x128xf32>
    %cst_68 = arith.constant 5.000000e-01 : f32
    %258 = vector.broadcast %cst_68 : f32 to vector<2x128xf32>
    %259 = arith.mulf %258, %257 : vector<2x128xf32>
    %cst_69 = arith.constant 5.000000e-01 : f32
    %260 = vector.broadcast %cst_69 : f32 to vector<2x128xf32>
    %261 = arith.addf %259, %260 : vector<2x128xf32>
    %262 = vector.extract_strided_slice %261 {offsets = [0, 0], sizes = [2, 32], strides = [1, 1]} : vector<2x128xf32> to vector<2x32xf32>
    %263 = vector.extract_strided_slice %257 {offsets = [0, 64], sizes = [2, 32], strides = [1, 1]} : vector<2x128xf32> to vector<2x32xf32>
    %264 = vector.extract_strided_slice %261 {offsets = [0, 96], sizes = [2, 32], strides = [1, 1]} : vector<2x128xf32> to vector<2x32xf32>
    %265 = vector.extract_strided_slice %261 {offsets = [0, 32], sizes = [2, 32], strides = [1, 1]} : vector<2x128xf32> to vector<2x32xf32>
    %266 = arith.mulf %265, %232 : vector<2x32xf32>
    %267 = arith.mulf %262, %263 : vector<2x32xf32>
    %268 = arith.addf %266, %267 : vector<2x32xf32>
    %269 = math.tanh %268 : vector<2x32xf32>
    %270 = arith.mulf %264, %269 : vector<2x32xf32>
    %cst_70 = arith.constant dense<0.000000e+00> : vector<2x128xf32>
    %271 = tpu.matmul %270, %3, %cst_70 {dimension_numbers = #tpu.dot_dimension_numbers<[1], [0], [0], [1], [0, 0, 1, 1], [], []>} : vector<2x32xf32>, vector<32x128xf32>, vector<2x128xf32> -> vector<2x128xf32>
    %272 = arith.addf %271, %10 : vector<2x128xf32>
    %cst_71 = arith.constant dense<0.000000e+00> : vector<2x128xf32>
    %273 = tpu.matmul %252, %4, %cst_71 {dimension_numbers = #tpu.dot_dimension_numbers<[1], [0], [0], [1], [0, 0, 1, 1], [], []>} : vector<2x32xf32>, vector<32x128xf32>, vector<2x128xf32> -> vector<2x128xf32>
    %274 = arith.addf %272, %273 : vector<2x128xf32>
    %275 = math.tanh %274 : vector<2x128xf32>
    %cst_72 = arith.constant 5.000000e-01 : f32
    %276 = vector.broadcast %cst_72 : f32 to vector<2x128xf32>
    %277 = arith.mulf %276, %275 : vector<2x128xf32>
    %cst_73 = arith.constant 5.000000e-01 : f32
    %278 = vector.broadcast %cst_73 : f32 to vector<2x128xf32>
    %279 = arith.addf %277, %278 : vector<2x128xf32>
    %280 = vector.extract_strided_slice %279 {offsets = [0, 0], sizes = [2, 32], strides = [1, 1]} : vector<2x128xf32> to vector<2x32xf32>
    %281 = vector.extract_strided_slice %275 {offsets = [0, 64], sizes = [2, 32], strides = [1, 1]} : vector<2x128xf32> to vector<2x32xf32>
    %282 = vector.extract_strided_slice %279 {offsets = [0, 96], sizes = [2, 32], strides = [1, 1]} : vector<2x128xf32> to vector<2x32xf32>
    %283 = vector.extract_strided_slice %279 {offsets = [0, 32], sizes = [2, 32], strides = [1, 1]} : vector<2x128xf32> to vector<2x32xf32>
    %284 = arith.mulf %283, %250 : vector<2x32xf32>
    %285 = arith.mulf %280, %281 : vector<2x32xf32>
    %286 = arith.addf %284, %285 : vector<2x32xf32>
    %287 = math.tanh %286 : vector<2x32xf32>
    %288 = arith.mulf %282, %287 : vector<2x32xf32>
    %289 = tpu.concatenate %36, %72, %108, %144, %180, %216, %252, %288 in 1 : vector<2x32xf32>, vector<2x32xf32>, vector<2x32xf32>, vector<2x32xf32>, vector<2x32xf32>, vector<2x32xf32>, vector<2x32xf32>, vector<2x32xf32> -> vector<2x256xf32>
    %c0_74 = arith.constant 0 : index
    %c0_75 = arith.constant 0 : index
    %290 = vector.load %arg7[%c0_74, %c0_75] : memref<2x256xf32, #tpu.memory_space<vmem>>, vector<2x256xf32>
    tpu.vector_store %arg7[%c0_74, %c0_75], %289 {strides = array<i32>} : memref<2x256xf32, #tpu.memory_space<vmem>>, vector<2x256xf32>,
    return
  }
}

</mosaic_0001>

<llo_original>
// kernel: generator_forward.1
$region0: #{generator_forward.1}
  #allocation0 [shape = 'u32[]', space=smem, size = 0x4, offset = 0x4, fixed_abs, tag = 'smem constant byte address 0x4 - core index']
  #allocation1 [shape = 'u32[144,128]{1,0:T(1,128)}', space=vmem, size = 0x12000, scoped, tag = 'internal scratch']
  %s0 = inlined_call_operand.hbm [shape: f32[2,32], index: 0, kind: input, shape index: {}]
  %s1 = inlined_call_operand.hbm [shape: f32[32,128], index: 1, kind: input, shape index: {}]
  %s2 = inlined_call_operand.hbm [shape: f32[32,128], index: 2, kind: input, shape index: {}]
  %s3 = inlined_call_operand.vmem [shape: f32[1,128], index: 3, kind: input, shape index: {}]
  %s4 = inlined_call_operand.hbm [shape: f32[32,128], index: 4, kind: input, shape index: {}]
  %s5 = inlined_call_operand.hbm [shape: f32[32,128], index: 5, kind: input, shape index: {}]
  %s6 = inlined_call_operand.vmem [shape: f32[1,128], index: 6, kind: input, shape index: {}]
  %s7 = inlined_call_operand.vmem [shape: f32[2,256], index: 7, kind: output, shape index: {}]
  %s8 = sld [smem:[#allocation0]]
  $region58: #{generator_forward.1} parent=0
    _
  %s10 = ssub.s32 1, %s8
  %s11 = scalar_select 0, %s10, %s8
  $region1: #{generator_forward.1} parent=0
    #allocation2 [shape = 'u8[1024]{0}', space=vmem, size = 0x400, scoped, tag = 'input window, operand 0, single buffered']
    #allocation3 [shape = 's32[1]{0}', space=sflag, size = 0x4, scoped, tag = 'scoped memory for generator_forward.1']
    #allocation4 [shape = 'u8[16384]{0}', space=vmem, size = 0x4000, scoped, tag = 'input window, operand 1, single buffered']
    #allocation5 [shape = 's32[1]{0}', space=sflag, size = 0x4, scoped, tag = 'scoped memory for generator_forward.1']
    #allocation6 [shape = 'u8[16384]{0}', space=vmem, size = 0x4000, scoped, tag = 'input window, operand 2, single buffered']
    #allocation7 [shape = 'u8[16384]{0}', space=vmem, size = 0x4000, scoped, tag = 'input window, operand 4, single buffered']
    #allocation8 [shape = 's32[1]{0}', space=sflag, size = 0x4, scoped, tag = 'scoped memory for generator_forward.1']
    #allocation9 [shape = 'u8[16384]{0}', space=vmem, size = 0x4000, scoped, tag = 'input window, operand 5, single buffered']
    %12 = vsyncpa [#allocation3], 0
    %13 = vsyncpa [#allocation5], 0
    %14 = vsyncpa [#allocation8], 0
    // Predicated region
    $region2: #{generator_forward.1} parent=1 // pred_check
      _
    $region3: #{generator_forward.1} parent=1 // pred_check_branch
      %16 = sbr.rel (0) target = $region5
    $region4: #{generator_forward.1} parent=1 // pred_region
      %s18 = ssub.s32 32, 32
      %19 = vsyncadd [#allocation3], %s18
      %s21 = sshll.u32 [#allocation2], 4
      %s22 = int_to_ptr.vmem [resolvable:$true] %s21
      %24 = dma.hbm_to_vmem [thread:$0]  %s0, 32, %s22, [#allocation3]
    $region5: #{generator_forward.1} parent=1 // pred_fallthru
      _
    // Predicated region
    $region6: #{generator_forward.1} parent=1 // pred_check
      _
    $region7: #{generator_forward.1} parent=1 // pred_check_branch
      %26 = sbr.rel (0) target = $region9
    $region8: #{generator_forward.1} parent=1 // pred_region
      %s28 = ssub.s32 512, 512
      %29 = vsyncadd [#allocation5], %s28
      %s30 = sshll.u32 [#allocation4], 4
      %s31 = int_to_ptr.vmem [resolvable:$true] %s30
      %36 = dma.hbm_to_vmem [thread:$0]  %s1, 512, %s31, [#allocation5], 128, 128, 8
    $region9: #{generator_forward.1} parent=1 // pred_fallthru
      _
    // Predicated region
    $region10: #{generator_forward.1} parent=1 // pred_check
      _
    $region11: #{generator_forward.1} parent=1 // pred_check_branch
      %38 = sbr.rel (0) target = $region13
    $region12: #{generator_forward.1} parent=1 // pred_region
      %s40 = ssub.s32 512, 512
      %41 = vsyncadd [#allocation5], %s40
      %s42 = sshll.u32 [#allocation6], 4
      %s43 = int_to_ptr.vmem [resolvable:$true] %s42
      %48 = dma.hbm_to_vmem [thread:$0]  %s2, 512, %s43, [#allocation5], 128, 128, 8
    $region13: #{generator_forward.1} parent=1 // pred_fallthru
      _
    // Predicated region
    $region14: #{generator_forward.1} parent=1 // pred_check
      _
    $region15: #{generator_forward.1} parent=1 // pred_check_branch
      %50 = sbr.rel (0) target = $region17
    $region16: #{generator_forward.1} parent=1 // pred_region
      _
    $region17: #{generator_forward.1} parent=1 // pred_fallthru
      _
    // Predicated region
    $region18: #{generator_forward.1} parent=1 // pred_check
      _
    $region19: #{generator_forward.1} parent=1 // pred_check_branch
      %52 = sbr.rel (0) target = $region21
    $region20: #{generator_forward.1} parent=1 // pred_region
      %s54 = ssub.s32 512, 512
      %55 = vsyncadd [#allocation8], %s54
      %s56 = sshll.u32 [#allocation7], 4
      %s57 = int_to_ptr.vmem [resolvable:$true] %s56
      %62 = dma.hbm_to_vmem [thread:$0]  %s4, 512, %s57, [#allocation8], 128, 128, 8
    $region21: #{generator_forward.1} parent=1 // pred_fallthru
      _
    // Predicated region
    $region22: #{generator_forward.1} parent=1 // pred_check
      _
    $region23: #{generator_forward.1} parent=1 // pred_check_branch
      %64 = sbr.rel (0) target = $region25
    $region24: #{generator_forward.1} parent=1 // pred_region
      %s66 = ssub.s32 512, 512
      %67 = vsyncadd [#allocation8], %s66
      %s68 = sshll.u32 [#allocation9], 4
      %s69 = int_to_ptr.vmem [resolvable:$true] %s68
      %74 = dma.hbm_to_vmem [thread:$0]  %s5, 512, %s69, [#allocation8], 128, 128, 8
    $region25: #{generator_forward.1} parent=1 // pred_fallthru
      _
    // Predicated region
    $region26: #{generator_forward.1} parent=1 // pred_check
      _
    $region27: #{generator_forward.1} parent=1 // pred_check_branch
      %76 = sbr.rel (0) target = $region29
    $region28: #{generator_forward.1} parent=1 // pred_region
      _
    $region29: #{generator_forward.1} parent=1 // pred_fallthru
      _
    // Predicated region
    $region30: #{generator_forward.1} parent=1 // pred_check
      _
    $region31: #{generator_forward.1} parent=1 // pred_check_branch
      %78 = sbr.rel (0) target = $region33
    $region32: #{generator_forward.1} parent=1 // pred_region
      %79 = dma.done [#allocation3], 32
    $region33: #{generator_forward.1} parent=1 // pred_fallthru
      _
    // Predicated region
    $region34: #{generator_forward.1} parent=1 // pred_check
      _
    $region35: #{generator_forward.1} parent=1 // pred_check_branch
      %81 = sbr.rel (0) target = $region37
    $region36: #{generator_forward.1} parent=1 // pred_region
      %82 = dma.done [#allocation5], 512
    $region37: #{generator_forward.1} parent=1 // pred_fallthru
      _
    // Predicated region
    $region38: #{generator_forward.1} parent=1 // pred_check
      _
    $region39: #{generator_forward.1} parent=1 // pred_check_branch
      %84 = sbr.rel (0) target = $region41
    $region40: #{generator_forward.1} parent=1 // pred_region
      %85 = dma.done [#allocation5], 512
    $region41: #{generator_forward.1} parent=1 // pred_fallthru
      _
    // Predicated region
    $region42: #{generator_forward.1} parent=1 // pred_check
      _
    $region43: #{generator_forward.1} parent=1 // pred_check_branch
      %87 = sbr.rel (0) target = $region45
    $region44: #{generator_forward.1} parent=1 // pred_region
      %88 = dma.done [#allocation8], 512
    $region45: #{generator_forward.1} parent=1 // pred_fallthru
      _
    // Predicated region
    $region46: #{generator_forward.1} parent=1 // pred_check
      _
    $region47: #{generator_forward.1} parent=1 // pred_check_branch
      %90 = sbr.rel (0) target = $region49
    $region48: #{generator_forward.1} parent=1 // pred_region
      %91 = dma.done [#allocation8], 512
    $region49: #{generator_forward.1} parent=1 // pred_fallthru
      _
    %v92 = vld [vmem:[#allocation2] sm:$0x3]
    %v93 = vld [vmem:[#allocation4] sm:$0xff]
    %v94 = vld [vmem:[#allocation4 + $0x8] sm:$0xff]
    %v95 = vld [vmem:[#allocation4 + $0x10] sm:$0xff]
    %v96 = vld [vmem:[#allocation4 + $0x18] sm:$0xff]
    %v97 = vld [vmem:[#allocation6] sm:$0xff]
    %v98 = vld [vmem:[#allocation6 + $0x8] sm:$0xff]
    %v99 = vld [vmem:[#allocation6 + $0x10] sm:$0xff]
    %v100 = vld [vmem:[#allocation6 + $0x18] sm:$0xff]
    %v101 = vld [vmem:[#allocation7] sm:$0xff]
    %v102 = vld [vmem:[#allocation7 + $0x8] sm:$0xff]
    %v103 = vld [vmem:[#allocation7 + $0x10] sm:$0xff]
    %v104 = vld [vmem:[#allocation7 + $0x18] sm:$0xff]
    %v105 = vld [vmem:[#allocation9] sm:$0xff]
    %v106 = vld [vmem:[#allocation9 + $0x8] sm:$0xff]
    %v107 = vld [vmem:[#allocation9 + $0x10] sm:$0xff]
    %v108 = vld [vmem:[#allocation9 + $0x18] sm:$0xff]
    %v109 = vld [vmem:[%s3] sm:$0x1]
    %v111 = vlaneseq
    %v112 = vshrl.u32 %v111, 7
    %v113 = vsub.s32 0, %v112
    %v114 = vrot.slane %v109, %v113
    %v116 = vld [vmem:[%s6] sm:$0x1]
    %v118 = vlaneseq
    %v119 = vshrl.u32 %v118, 7
    %v120 = vsub.s32 0, %v119
    %v121 = vrot.slane %v116, %v120
    %vm123 = vcmask 261120
    %v125 = vsel %vm123, %v92, 0
    %127 = vmatprep.subr.mxu0 0.0
    %128 = vmatpush1.msra.mxu0 %v93
    %129 = vmatprep.subr.mxu0 0.0
    %130 = vmatpush1.msra.mxu0 %v94
    %131 = vmatprep.subr.mxu0 0.0
    %132 = vmatpush1.msra.mxu0 %v95
    %133 = vmatprep.subr.mxu0 0.0
    %134 = vmatpush1.msra.mxu0 %v96
    %135 = vmatprep.subr.mxu0 0.0
    %136 = vmatpush1.msra.mxu0 0.0
    %137 = vmatprep.subr.mxu0 0.0
    %138 = vmatpush1.msra.mxu0 0.0
    %139 = vmatprep.subr.mxu0 0.0
    %140 = vmatpush1.msra.mxu0 0.0
    %141 = vmatprep.subr.mxu0 0.0
    %142 = vmatpush1.msra.mxu0 0.0
    %143 = vmatprep.subr.mxu0 0.0
    %144 = vmatpush1.msra.mxu0 0.0
    %145 = vmatprep.subr.mxu0 0.0
    %146 = vmatpush1.msra.mxu0 0.0
    %147 = vmatprep.subr.mxu0 0.0
    %148 = vmatpush1.msra.mxu0 0.0
    %149 = vmatprep.subr.mxu0 0.0
    %150 = vmatpush1.msra.mxu0 0.0
    %151 = vmatprep.subr.mxu0 0.0
    %152 = vmatpush1.msra.mxu0 0.0
    %153 = vmatprep.subr.mxu0 0.0
    %154 = vmatpush1.msra.mxu0 0.0
    %155 = vmatprep.subr.mxu0 0.0
    %156 = vmatpush1.msra.mxu0 0.0
    %157 = vmatprep.subr.mxu0 0.0
    %158 = vmatpush1.msra.mxu0 0.0
    %159 = vmatprep.subr.mxu0 0.0
    %160 = vmatpush1.msra.mxu0 0.0
    %161 = vmatprep.subr.mxu0 0.0
    %162 = vmatpush1.msra.mxu0 0.0
    %163 = vmatprep.subr.mxu0 0.0
    %164 = vmatpush1.msra.mxu0 0.0
    %165 = vmatprep.subr.mxu0 0.0
    %166 = vmatpush1.msra.mxu0 0.0
    %167 = vmatprep.subr.mxu0 0.0
    %168 = vmatpush1.msra.mxu0 0.0
    %169 = vmatprep.subr.mxu0 0.0
    %170 = vmatpush1.msra.mxu0 0.0
    %171 = vmatprep.subr.mxu0 0.0
    %172 = vmatpush1.msra.mxu0 0.0
    %173 = vmatprep.subr.mxu0 0.0
    %174 = vmatpush1.msra.mxu0 0.0
    %175 = vmatprep.subr.mxu0 0.0
    %176 = vmatpush1.msra.mxu0 0.0
    %177 = vmatprep.subr.mxu0 0.0
    %178 = vmatpush1.msra.mxu0 0.0
    %179 = vmatprep.subr.mxu0 0.0
    %180 = vmatpush1.msra.mxu0 0.0
    %181 = vmatprep.subr.mxu0 0.0
    %182 = vmatpush1.msra.mxu0 0.0
    %183 = vmatprep.subr.mxu0 0.0
    %184 = vmatpush1.msra.mxu0 0.0
    %185 = vmatprep.subr.mxu0 0.0
    %186 = vmatpush1.msra.mxu0 0.0
    %187 = vmatprep.subr.mxu0 0.0
    %188 = vmatpush1.msra.mxu0 0.0
    %189 = vmatprep.subr.mxu0 0.0
    %190 = vmatpush1.msra.mxu0 0.0
    %191 = vmatprep.mubr.f32.mxu0 0.0
    %192 = vmatmul.mubr.f32.gmra.mrb[0].mxu0 %v125
    %v193 = vpop.f32.mrb[0].mxu0
    %v194 = vadd.f32 %v114, %v193
    %v195 = vpop.f32.mrb[0].mxu0
    %196 = vdwg.mxu0
    %v197 = vtanh.pop %v194
    %v198 = vmul.f32 %v197, 0.5
    %v199 = vadd.f32 %v198, 0.5
    %201 = vrot.lane.b32.xlu0 %v197, 64
    %v202 = vpop.permute.xlu0 %201
    %v204 = vmul.f32 %v199, %v202
    %v205 = vtanh.pop %v204
    %207 = vrot.lane.b32.xlu0 %v205, 96
    %v208 = vpop.permute.xlu0 %207
    %v210 = vmul.f32 %v199, %v208
    %212 = vrot.lane.b32.xlu0 %v210, 32
    %v213 = vpop.permute.xlu0 %212
    %v214 = vsel %vm123, %v213, 0
    %216 = vmatprep.subr.mxu0 0.0
    %217 = vmatpush1.msra.mxu0 %v101
    %218 = vmatprep.subr.mxu0 0.0
    %219 = vmatpush1.msra.mxu0 %v102
    %220 = vmatprep.subr.mxu0 0.0
    %221 = vmatpush1.msra.mxu0 %v103
    %222 = vmatprep.subr.mxu0 0.0
    %223 = vmatpush1.msra.mxu0 %v104
    %224 = vmatprep.subr.mxu0 0.0
    %225 = vmatpush1.msra.mxu0 0.0
    %226 = vmatprep.subr.mxu0 0.0
    %227 = vmatpush1.msra.mxu0 0.0
    %228 = vmatprep.subr.mxu0 0.0
    %229 = vmatpush1.msra.mxu0 0.0
    %230 = vmatprep.subr.mxu0 0.0
    %231 = vmatpush1.msra.mxu0 0.0
    %232 = vmatprep.subr.mxu0 0.0
    %233 = vmatpush1.msra.mxu0 0.0
    %234 = vmatprep.subr.mxu0 0.0
    %235 = vmatpush1.msra.mxu0 0.0
    %236 = vmatprep.subr.mxu0 0.0
    %237 = vmatpush1.msra.mxu0 0.0
    %238 = vmatprep.subr.mxu0 0.0
    %239 = vmatpush1.msra.mxu0 0.0
    %240 = vmatprep.subr.mxu0 0.0
    %241 = vmatpush1.msra.mxu0 0.0
    %242 = vmatprep.subr.mxu0 0.0
    %243 = vmatpush1.msra.mxu0 0.0
    %244 = vmatprep.subr.mxu0 0.0
    %245 = vmatpush1.msra.mxu0 0.0
    %246 = vmatprep.subr.mxu0 0.0
    %247 = vmatpush1.msra.mxu0 0.0
    %248 = vmatprep.subr.mxu0 0.0
    %249 = vmatpush1.msra.mxu0 0.0
    %250 = vmatprep.subr.mxu0 0.0
    %251 = vmatpush1.msra.mxu0 0.0
    %252 = vmatprep.subr.mxu0 0.0
    %253 = vmatpush1.msra.mxu0 0.0
    %254 = vmatprep.subr.mxu0 0.0
    %255 = vmatpush1.msra.mxu0 0.0
    %256 = vmatprep.subr.mxu0 0.0
    %257 = vmatpush1.msra.mxu0 0.0
    %258 = vmatprep.subr.mxu0 0.0
    %259 = vmatpush1.msra.mxu0 0.0
    %260 = vmatprep.subr.mxu0 0.0
    %261 = vmatpush1.msra.mxu0 0.0
    %262 = vmatprep.subr.mxu0 0.0
    %263 = vmatpush1.msra.mxu0 0.0
    %264 = vmatprep.subr.mxu0 0.0
    %265 = vmatpush1.msra.mxu0 0.0
    %266 = vmatprep.subr.mxu0 0.0
    %267 = vmatpush1.msra.mxu0 0.0
    %268 = vmatprep.subr.mxu0 0.0
    %269 = vmatpush1.msra.mxu0 0.0
    %270 = vmatprep.subr.mxu0 0.0
    %271 = vmatpush1.msra.mxu0 0.0
    %272 = vmatprep.subr.mxu0 0.0
    %273 = vmatpush1.msra.mxu0 0.0
    %274 = vmatprep.subr.mxu0 0.0
    %275 = vmatpush1.msra.mxu0 0.0
    %276 = vmatprep.subr.mxu0 0.0
    %277 = vmatpush1.msra.mxu0 0.0
    %278 = vmatprep.subr.mxu0 0.0
    %279 = vmatpush1.msra.mxu0 0.0
    %280 = vmatprep.mubr.f32.mxu0 0.0
    %281 = vmatmul.mubr.f32.gmra.mrb[0].mxu0 %v214
    %v282 = vpop.f32.mrb[0].mxu0
    %v283 = vadd.f32 %v121, %v282
    %v284 = vpop.f32.mrb[0].mxu0
    %285 = vdwg.mxu0
    %v286 = vtanh.pop %v283
    %v287 = vmul.f32 %v286, 0.5
    %v288 = vadd.f32 %v287, 0.5
    %290 = vrot.lane.b32.xlu0 %v286, 64
    %v291 = vpop.permute.xlu0 %290
    %v293 = vmul.f32 %v288, %v291
    %v294 = vtanh.pop %v293
    %296 = vrot.lane.b32.xlu0 %v294, 96
    %v297 = vpop.permute.xlu0 %296
    %v299 = vmul.f32 %v288, %v297
    %301 = vrot.lane.b32.xlu0 %v299, 32
    %v302 = vpop.permute.xlu0 %301
    %v303 = vsel %vm123, %v302, 0
    %305 = vmatprep.subr.mxu0 0.0
    %306 = vmatpush1.msra.mxu0 %v93
    %307 = vmatprep.subr.mxu0 0.0
    %308 = vmatpush1.msra.mxu0 %v94
    %309 = vmatprep.subr.mxu0 0.0
    %310 = vmatpush1.msra.mxu0 %v95
    %311 = vmatprep.subr.mxu0 0.0
    %312 = vmatpush1.msra.mxu0 %v96
    %313 = vmatprep.subr.mxu0 0.0
    %314 = vmatpush1.msra.mxu0 0.0
    %315 = vmatprep.subr.mxu0 0.0
    %316 = vmatpush1.msra.mxu0 0.0
    %317 = vmatprep.subr.mxu0 0.0
    %318 = vmatpush1.msra.mxu0 0.0
    %319 = vmatprep.subr.mxu0 0.0
    %320 = vmatpush1.msra.mxu0 0.0
    %321 = vmatprep.subr.mxu0 0.0
    %322 = vmatpush1.msra.mxu0 0.0
    %323 = vmatprep.subr.mxu0 0.0
    %324 = vmatpush1.msra.mxu0 0.0
    %325 = vmatprep.subr.mxu0 0.0
    %326 = vmatpush1.msra.mxu0 0.0
    %327 = vmatprep.subr.mxu0 0.0
    %328 = vmatpush1.msra.mxu0 0.0
    %329 = vmatprep.subr.mxu0 0.0
    %330 = vmatpush1.msra.mxu0 0.0
    %331 = vmatprep.subr.mxu0 0.0
    %332 = vmatpush1.msra.mxu0 0.0
    %333 = vmatprep.subr.mxu0 0.0
    %334 = vmatpush1.msra.mxu0 0.0
    %335 = vmatprep.subr.mxu0 0.0
    %336 = vmatpush1.msra.mxu0 0.0
    %337 = vmatprep.subr.mxu0 0.0
    %338 = vmatpush1.msra.mxu0 0.0
    %339 = vmatprep.subr.mxu0 0.0
    %340 = vmatpush1.msra.mxu0 0.0
    %341 = vmatprep.subr.mxu0 0.0
    %342 = vmatpush1.msra.mxu0 0.0
    %343 = vmatprep.subr.mxu0 0.0
    %344 = vmatpush1.msra.mxu0 0.0
    %345 = vmatprep.subr.mxu0 0.0
    %346 = vmatpush1.msra.mxu0 0.0
    %347 = vmatprep.subr.mxu0 0.0
    %348 = vmatpush1.msra.mxu0 0.0
    %349 = vmatprep.subr.mxu0 0.0
    %350 = vmatpush1.msra.mxu0 0.0
    %351 = vmatprep.subr.mxu0 0.0
    %352 = vmatpush1.msra.mxu0 0.0
    %353 = vmatprep.subr.mxu0 0.0
    %354 = vmatpush1.msra.mxu0 0.0
    %355 = vmatprep.subr.mxu0 0.0
    %356 = vmatpush1.msra.mxu0 0.0
    %357 = vmatprep.subr.mxu0 0.0
    %358 = vmatpush1.msra.mxu0 0.0
    %359 = vmatprep.subr.mxu0 0.0
    %360 = vmatpush1.msra.mxu0 0.0
    %361 = vmatprep.subr.mxu0 0.0
    %362 = vmatpush1.msra.mxu0 0.0
    %363 = vmatprep.subr.mxu0 0.0
    %364 = vmatpush1.msra.mxu0 0.0
    %365 = vmatprep.subr.mxu0 0.0
    %366 = vmatpush1.msra.mxu0 0.0
    %367 = vmatprep.subr.mxu0 0.0
    %368 = vmatpush1.msra.mxu0 0.0
    %369 = vmatprep.mubr.f32.mxu0 0.0
    %370 = vmatmul.mubr.f32.gmra.mrb[0].mxu0 %v303
    %v371 = vpop.f32.mrb[0].mxu0
    %v372 = vadd.f32 %v114, %v371
    %v373 = vpop.f32.mrb[0].mxu0
    %374 = vdwg.mxu0
    %375 = vmatprep.subr.mxu0 0.0
    %376 = vmatpush1.msra.mxu0 %v97
    %377 = vmatprep.subr.mxu0 0.0
    %378 = vmatpush1.msra.mxu0 %v98
    %379 = vmatprep.subr.mxu0 0.0
    %380 = vmatpush1.msra.mxu0 %v99
    %381 = vmatprep.subr.mxu0 0.0
    %382 = vmatpush1.msra.mxu0 %v100
    %383 = vmatprep.subr.mxu0 0.0
    %384 = vmatpush1.msra.mxu0 0.0
    %385 = vmatprep.subr.mxu0 0.0
    %386 = vmatpush1.msra.mxu0 0.0
    %387 = vmatprep.subr.mxu0 0.0
    %388 = vmatpush1.msra.mxu0 0.0
    %389 = vmatprep.subr.mxu0 0.0
    %390 = vmatpush1.msra.mxu0 0.0
    %391 = vmatprep.subr.mxu0 0.0
    %392 = vmatpush1.msra.mxu0 0.0
    %393 = vmatprep.subr.mxu0 0.0
    %394 = vmatpush1.msra.mxu0 0.0
    %395 = vmatprep.subr.mxu0 0.0
    %396 = vmatpush1.msra.mxu0 0.0
    %397 = vmatprep.subr.mxu0 0.0
    %398 = vmatpush1.msra.mxu0 0.0
    %399 = vmatprep.subr.mxu0 0.0
    %400 = vmatpush1.msra.mxu0 0.0
    %401 = vmatprep.subr.mxu0 0.0
    %402 = vmatpush1.msra.mxu0 0.0
    %403 = vmatprep.subr.mxu0 0.0
    %404 = vmatpush1.msra.mxu0 0.0
    %405 = vmatprep.subr.mxu0 0.0
    %406 = vmatpush1.msra.mxu0 0.0
    %407 = vmatprep.subr.mxu0 0.0
    %408 = vmatpush1.msra.mxu0 0.0
    %409 = vmatprep.subr.mxu0 0.0
    %410 = vmatpush1.msra.mxu0 0.0
    %411 = vmatprep.subr.mxu0 0.0
    %412 = vmatpush1.msra.mxu0 0.0
    %413 = vmatprep.subr.mxu0 0.0
    %414 = vmatpush1.msra.mxu0 0.0
    %415 = vmatprep.subr.mxu0 0.0
    %416 = vmatpush1.msra.mxu0 0.0
    %417 = vmatprep.subr.mxu0 0.0
    %418 = vmatpush1.msra.mxu0 0.0
    %419 = vmatprep.subr.mxu0 0.0
    %420 = vmatpush1.msra.mxu0 0.0
    %421 = vmatprep.subr.mxu0 0.0
    %422 = vmatpush1.msra.mxu0 0.0
    %423 = vmatprep.subr.mxu0 0.0
    %424 = vmatpush1.msra.mxu0 0.0
    %425 = vmatprep.subr.mxu0 0.0
    %426 = vmatpush1.msra.mxu0 0.0
    %427 = vmatprep.subr.mxu0 0.0
    %428 = vmatpush1.msra.mxu0 0.0
    %429 = vmatprep.subr.mxu0 0.0
    %430 = vmatpush1.msra.mxu0 0.0
    %431 = vmatprep.subr.mxu0 0.0
    %432 = vmatpush1.msra.mxu0 0.0
    %433 = vmatprep.subr.mxu0 0.0
    %434 = vmatpush1.msra.mxu0 0.0
    %435 = vmatprep.subr.mxu0 0.0
    %436 = vmatpush1.msra.mxu0 0.0
    %437 = vmatprep.subr.mxu0 0.0
    %438 = vmatpush1.msra.mxu0 0.0
    %439 = vmatprep.mubr.f32.mxu0 0.0
    %440 = vmatmul.mubr.f32.gmra.mrb[0].mxu0 %v214
    %v441 = vpop.f32.mrb[0].mxu0
    %v442 = vadd.f32 0.0, %v441
    %v443 = vpop.f32.mrb[0].mxu0
    %444 = vdwg.mxu0
    %v445 = vadd.f32 %v372, %v442
    %v446 = vtanh.pop %v445
    %v447 = vmul.f32 %v446, 0.5
    %v448 = vadd.f32 %v447, 0.5
    %450 = vrot.lane.b32.xlu0 %v204, 32
    %v451 = vpop.permute.xlu0 %450
    %v453 = vmul.f32 %v448, %v451
    %455 = vrot.lane.b32.xlu0 %v446, 64
    %v456 = vpop.permute.xlu0 %455
    %v458 = vmul.f32 %v448, %v456
    %460 = vrot.lane.b32.xlu0 %v458, 32
    %v461 = vpop.permute.xlu0 %460
    %v463 = vadd.f32 %v453, %v461
    %v464 = vtanh.pop %v463
    %466 = vrot.lane.b32.xlu0 %v464, 64
    %v467 = vpop.permute.xlu0 %466
    %v469 = vmul.f32 %v448, %v467
    %471 = vrot.lane.b32.xlu0 %v469, 32
    %v472 = vpop.permute.xlu0 %471
    %v473 = vsel %vm123, %v472, 0
    %475 = vmatprep.subr.mxu0 0.0
    %476 = vmatpush1.msra.mxu0 %v101
    %477 = vmatprep.subr.mxu0 0.0
    %478 = vmatpush1.msra.mxu0 %v102
    %479 = vmatprep.subr.mxu0 0.0
    %480 = vmatpush1.msra.mxu0 %v103
    %481 = vmatprep.subr.mxu0 0.0
    %482 = vmatpush1.msra.mxu0 %v104
    %483 = vmatprep.subr.mxu0 0.0
    %484 = vmatpush1.msra.mxu0 0.0
    %485 = vmatprep.subr.mxu0 0.0
    %486 = vmatpush1.msra.mxu0 0.0
    %487 = vmatprep.subr.mxu0 0.0
    %488 = vmatpush1.msra.mxu0 0.0
    %489 = vmatprep.subr.mxu0 0.0
    %490 = vmatpush1.msra.mxu0 0.0
    %491 = vmatprep.subr.mxu0 0.0
    %492 = vmatpush1.msra.mxu0 0.0
    %493 = vmatprep.subr.mxu0 0.0
    %494 = vmatpush1.msra.mxu0 0.0
    %495 = vmatprep.subr.mxu0 0.0
    %496 = vmatpush1.msra.mxu0 0.0
    %497 = vmatprep.subr.mxu0 0.0
    %498 = vmatpush1.msra.mxu0 0.0
    %499 = vmatprep.subr.mxu0 0.0
    %500 = vmatpush1.msra.mxu0 0.0
    %501 = vmatprep.subr.mxu0 0.0
    %502 = vmatpush1.msra.mxu0 0.0
    %503 = vmatprep.subr.mxu0 0.0
    %504 = vmatpush1.msra.mxu0 0.0
    %505 = vmatprep.subr.mxu0 0.0
    %506 = vmatpush1.msra.mxu0 0.0
    %507 = vmatprep.subr.mxu0 0.0
    %508 = vmatpush1.msra.mxu0 0.0
    %509 = vmatprep.subr.mxu0 0.0
    %510 = vmatpush1.msra.mxu0 0.0
    %511 = vmatprep.subr.mxu0 0.0
    %512 = vmatpush1.msra.mxu0 0.0
    %513 = vmatprep.subr.mxu0 0.0
    %514 = vmatpush1.msra.mxu0 0.0
    %515 = vmatprep.subr.mxu0 0.0
    %516 = vmatpush1.msra.mxu0 0.0
    %517 = vmatprep.subr.mxu0 0.0
    %518 = vmatpush1.msra.mxu0 0.0
    %519 = vmatprep.subr.mxu0 0.0
    %520 = vmatpush1.msra.mxu0 0.0
    %521 = vmatprep.subr.mxu0 0.0
    %522 = vmatpush1.msra.mxu0 0.0
    %523 = vmatprep.subr.mxu0 0.0
    %524 = vmatpush1.msra.mxu0 0.0
    %525 = vmatprep.subr.mxu0 0.0
    %526 = vmatpush1.msra.mxu0 0.0
    %527 = vmatprep.subr.mxu0 0.0
    %528 = vmatpush1.msra.mxu0 0.0
    %529 = vmatprep.subr.mxu0 0.0
    %530 = vmatpush1.msra.mxu0 0.0
    %531 = vmatprep.subr.mxu0 0.0
    %532 = vmatpush1.msra.mxu0 0.0
    %533 = vmatprep.subr.mxu0 0.0
    %534 = vmatpush1.msra.mxu0 0.0
    %535 = vmatprep.subr.mxu0 0.0
    %536 = vmatpush1.msra.mxu0 0.0
    %537 = vmatprep.subr.mxu0 0.0
    %538 = vmatpush1.msra.mxu0 0.0
    %539 = vmatprep.mubr.f32.mxu0 0.0
    %540 = vmatmul.mubr.f32.gmra.mrb[0].mxu0 %v473
    %v541 = vpop.f32.mrb[0].mxu0
    %v542 = vadd.f32 %v121, %v541
    %v543 = vpop.f32.mrb[0].mxu0
    %544 = vdwg.mxu0
    %545 = vmatprep.subr.mxu0 0.0
    %546 = vmatpush1.msra.mxu0 %v105
    %547 = vmatprep.subr.mxu0 0.0
    %548 = vmatpush1.msra.mxu0 %v106
    %549 = vmatprep.subr.mxu0 0.0
    %550 = vmatpush1.msra.mxu0 %v107
    %551 = vmatprep.subr.mxu0 0.0
    %552 = vmatpush1.msra.mxu0 %v108
    %553 = vmatprep.subr.mxu0 0.0
    %554 = vmatpush1.msra.mxu0 0.0
    %555 = vmatprep.subr.mxu0 0.0
    %556 = vmatpush1.msra.mxu0 0.0
    %557 = vmatprep.subr.mxu0 0.0
    %558 = vmatpush1.msra.mxu0 0.0
    %559 = vmatprep.subr.mxu0 0.0
    %560 = vmatpush1.msra.mxu0 0.0
    %561 = vmatprep.subr.mxu0 0.0
    %562 = vmatpush1.msra.mxu0 0.0
    %563 = vmatprep.subr.mxu0 0.0
    %564 = vmatpush1.msra.mxu0 0.0
    %565 = vmatprep.subr.mxu0 0.0
    %566 = vmatpush1.msra.mxu0 0.0
    %567 = vmatprep.subr.mxu0 0.0
    %568 = vmatpush1.msra.mxu0 0.0
    %569 = vmatprep.subr.mxu0 0.0
    %570 = vmatpush1.msra.mxu0 0.0
    %571 = vmatprep.subr.mxu0 0.0
    %572 = vmatpush1.msra.mxu0 0.0
    %573 = vmatprep.subr.mxu0 0.0
    %574 = vmatpush1.msra.mxu0 0.0
    %575 = vmatprep.subr.mxu0 0.0
    %576 = vmatpush1.msra.mxu0 0.0
    %577 = vmatprep.subr.mxu0 0.0
    %578 = vmatpush1.msra.mxu0 0.0
    %579 = vmatprep.subr.mxu0 0.0
    %580 = vmatpush1.msra.mxu0 0.0
    %581 = vmatprep.subr.mxu0 0.0
    %582 = vmatpush1.msra.mxu0 0.0
    %583 = vmatprep.subr.mxu0 0.0
    %584 = vmatpush1.msra.mxu0 0.0
    %585 = vmatprep.subr.mxu0 0.0
    %586 = vmatpush1.msra.mxu0 0.0
    %587 = vmatprep.subr.mxu0 0.0
    %588 = vmatpush1.msra.mxu0 0.0
    %589 = vmatprep.subr.mxu0 0.0
    %590 = vmatpush1.msra.mxu0 0.0
    %591 = vmatprep.subr.mxu0 0.0
    %592 = vmatpush1.msra.mxu0 0.0
    %593 = vmatprep.subr.mxu0 0.0
    %594 = vmatpush1.msra.mxu0 0.0
    %595 = vmatprep.subr.mxu0 0.0
    %596 = vmatpush1.msra.mxu0 0.0
    %597 = vmatprep.subr.mxu0 0.0
    %598 = vmatpush1.msra.mxu0 0.0
    %599 = vmatprep.subr.mxu0 0.0
    %600 = vmatpush1.msra.mxu0 0.0
    %601 = vmatprep.subr.mxu0 0.0
    %602 = vmatpush1.msra.mxu0 0.0
    %603 = vmatprep.subr.mxu0 0.0
    %604 = vmatpush1.msra.mxu0 0.0
    %605 = vmatprep.subr.mxu0 0.0
    %606 = vmatpush1.msra.mxu0 0.0
    %607 = vmatprep.subr.mxu0 0.0
    %608 = vmatpush1.msra.mxu0 0.0
    %609 = vmatprep.mubr.f32.mxu0 0.0
    %610 = vmatmul.mubr.f32.gmra.mrb[0].mxu0 %v303
    %v611 = vpop.f32.mrb[0].mxu0
    %v612 = vadd.f32 0.0, %v611
    %v613 = vpop.f32.mrb[0].mxu0
    %614 = vdwg.mxu0
    %v615 = vadd.f32 %v542, %v612
    %v616 = vtanh.pop %v615
    %v617 = vmul.f32 %v616, 0.5
    %v618 = vadd.f32 %v617, 0.5
    %620 = vrot.lane.b32.xlu0 %v293, 32
    %v621 = vpop.permute.xlu0 %620
    %v623 = vmul.f32 %v618, %v621
    %625 = vrot.lane.b32.xlu0 %v616, 64
    %v626 = vpop.permute.xlu0 %625
    %v628 = vmul.f32 %v618, %v626
    %630 = vrot.lane.b32.xlu0 %v628, 32
    %v631 = vpop.permute.xlu0 %630
    %v633 = vadd.f32 %v623, %v631
    %v634 = vtanh.pop %v633
    %636 = vrot.lane.b32.xlu0 %v634, 64
    %v637 = vpop.permute.xlu0 %636
    %v639 = vmul.f32 %v618, %v637
    %641 = vrot.lane.b32.xlu0 %v639, 32
    %v642 = vpop.permute.xlu0 %641
    %v643 = vsel %vm123, %v642, 0
    %645 = vmatprep.subr.mxu0 0.0
    %646 = vmatpush1.msra.mxu0 %v93
    %647 = vmatprep.subr.mxu0 0.0
    %648 = vmatpush1.msra.mxu0 %v94
    %649 = vmatprep.subr.mxu0 0.0
    %650 = vmatpush1.msra.mxu0 %v95
    %651 = vmatprep.subr.mxu0 0.0
    %652 = vmatpush1.msra.mxu0 %v96
    %653 = vmatprep.subr.mxu0 0.0
    %654 = vmatpush1.msra.mxu0 0.0
    %655 = vmatprep.subr.mxu0 0.0
    %656 = vmatpush1.msra.mxu0 0.0
    %657 = vmatprep.subr.mxu0 0.0
    %658 = vmatpush1.msra.mxu0 0.0
    %659 = vmatprep.subr.mxu0 0.0
    %660 = vmatpush1.msra.mxu0 0.0
    %661 = vmatprep.subr.mxu0 0.0
    %662 = vmatpush1.msra.mxu0 0.0
    %663 = vmatprep.subr.mxu0 0.0
    %664 = vmatpush1.msra.mxu0 0.0
    %665 = vmatprep.subr.mxu0 0.0
    %666 = vmatpush1.msra.mxu0 0.0
    %667 = vmatprep.subr.mxu0 0.0
    %668 = vmatpush1.msra.mxu0 0.0
    %669 = vmatprep.subr.mxu0 0.0
    %670 = vmatpush1.msra.mxu0 0.0
    %671 = vmatprep.subr.mxu0 0.0
    %672 = vmatpush1.msra.mxu0 0.0
    %673 = vmatprep.subr.mxu0 0.0
    %674 = vmatpush1.msra.mxu0 0.0
    %675 = vmatprep.subr.mxu0 0.0
    %676 = vmatpush1.msra.mxu0 0.0
    %677 = vmatprep.subr.mxu0 0.0
    %678 = vmatpush1.msra.mxu0 0.0
    %679 = vmatprep.subr.mxu0 0.0
    %680 = vmatpush1.msra.mxu0 0.0
    %681 = vmatprep.subr.mxu0 0.0
    %682 = vmatpush1.msra.mxu0 0.0
    %683 = vmatprep.subr.mxu0 0.0
    %684 = vmatpush1.msra.mxu0 0.0
    %685 = vmatprep.subr.mxu0 0.0
    %686 = vmatpush1.msra.mxu0 0.0
    %687 = vmatprep.subr.mxu0 0.0
    %688 = vmatpush1.msra.mxu0 0.0
    %689 = vmatprep.subr.mxu0 0.0
    %690 = vmatpush1.msra.mxu0 0.0
    %691 = vmatprep.subr.mxu0 0.0
    %692 = vmatpush1.msra.mxu0 0.0
    %693 = vmatprep.subr.mxu0 0.0
    %694 = vmatpush1.msra.mxu0 0.0
    %695 = vmatprep.subr.mxu0 0.0
    %696 = vmatpush1.msra.mxu0 0.0
    %697 = vmatprep.subr.mxu0 0.0
    %698 = vmatpush1.msra.mxu0 0.0
    %699 = vmatprep.subr.mxu0 0.0
    %700 = vmatpush1.msra.mxu0 0.0
    %701 = vmatprep.subr.mxu0 0.0
    %702 = vmatpush1.msra.mxu0 0.0
    %703 = vmatprep.subr.mxu0 0.0
    %704 = vmatpush1.msra.mxu0 0.0
    %705 = vmatprep.subr.mxu0 0.0
    %706 = vmatpush1.msra.mxu0 0.0
    %707 = vmatprep.subr.mxu0 0.0
    %708 = vmatpush1.msra.mxu0 0.0
    %709 = vmatprep.mubr.f32.mxu0 0.0
    %710 = vmatmul.mubr.f32.gmra.mrb[0].mxu0 %v643
    %v711 = vpop.f32.mrb[0].mxu0
    %v712 = vadd.f32 %v114, %v711
    %v713 = vpop.f32.mrb[0].mxu0
    %714 = vdwg.mxu0
    %715 = vmatprep.subr.mxu0 0.0
    %716 = vmatpush1.msra.mxu0 %v97
    %717 = vmatprep.subr.mxu0 0.0
    %718 = vmatpush1.msra.mxu0 %v98
    %719 = vmatprep.subr.mxu0 0.0
    %720 = vmatpush1.msra.mxu0 %v99
    %721 = vmatprep.subr.mxu0 0.0
    %722 = vmatpush1.msra.mxu0 %v100
    %723 = vmatprep.subr.mxu0 0.0
    %724 = vmatpush1.msra.mxu0 0.0
    %725 = vmatprep.subr.mxu0 0.0
    %726 = vmatpush1.msra.mxu0 0.0
    %727 = vmatprep.subr.mxu0 0.0
    %728 = vmatpush1.msra.mxu0 0.0
    %729 = vmatprep.subr.mxu0 0.0
    %730 = vmatpush1.msra.mxu0 0.0
    %731 = vmatprep.subr.mxu0 0.0
    %732 = vmatpush1.msra.mxu0 0.0
    %733 = vmatprep.subr.mxu0 0.0
    %734 = vmatpush1.msra.mxu0 0.0
    %735 = vmatprep.subr.mxu0 0.0
    %736 = vmatpush1.msra.mxu0 0.0
    %737 = vmatprep.subr.mxu0 0.0
    %738 = vmatpush1.msra.mxu0 0.0
    %739 = vmatprep.subr.mxu0 0.0
    %740 = vmatpush1.msra.mxu0 0.0
    %741 = vmatprep.subr.mxu0 0.0
    %742 = vmatpush1.msra.mxu0 0.0
    %743 = vmatprep.subr.mxu0 0.0
    %744 = vmatpush1.msra.mxu0 0.0
    %745 = vmatprep.subr.mxu0 0.0
    %746 = vmatpush1.msra.mxu0 0.0
    %747 = vmatprep.subr.mxu0 0.0
    %748 = vmatpush1.msra.mxu0 0.0
    %749 = vmatprep.subr.mxu0 0.0
    %750 = vmatpush1.msra.mxu0 0.0
    %751 = vmatprep.subr.mxu0 0.0
    %752 = vmatpush1.msra.mxu0 0.0
    %753 = vmatprep.subr.mxu0 0.0
    %754 = vmatpush1.msra.mxu0 0.0
    %755 = vmatprep.subr.mxu0 0.0
    %756 = vmatpush1.msra.mxu0 0.0
    %757 = vmatprep.subr.mxu0 0.0
    %758 = vmatpush1.msra.mxu0 0.0
    %759 = vmatprep.subr.mxu0 0.0
    %760 = vmatpush1.msra.mxu0 0.0
    %761 = vmatprep.subr.mxu0 0.0
    %762 = vmatpush1.msra.mxu0 0.0
    %763 = vmatprep.subr.mxu0 0.0
    %764 = vmatpush1.msra.mxu0 0.0
    %765 = vmatprep.subr.mxu0 0.0
    %766 = vmatpush1.msra.mxu0 0.0
    %767 = vmatprep.subr.mxu0 0.0
    %768 = vmatpush1.msra.mxu0 0.0
    %769 = vmatprep.subr.mxu0 0.0
    %770 = vmatpush1.msra.mxu0 0.0
    %771 = vmatprep.subr.mxu0 0.0
    %772 = vmatpush1.msra.mxu0 0.0
    %773 = vmatprep.subr.mxu0 0.0
    %774 = vmatpush1.msra.mxu0 0.0
    %775 = vmatprep.subr.mxu0 0.0
    %776 = vmatpush1.msra.mxu0 0.0
    %777 = vmatprep.subr.mxu0 0.0
    %778 = vmatpush1.msra.mxu0 0.0
    %779 = vmatprep.mubr.f32.mxu0 0.0
    %780 = vmatmul.mubr.f32.gmra.mrb[0].mxu0 %v473
    %v781 = vpop.f32.mrb[0].mxu0
    %v782 = vadd.f32 0.0, %v781
    %v783 = vpop.f32.mrb[0].mxu0
    %784 = vdwg.mxu0
    %v785 = vadd.f32 %v712, %v782
    %v786 = vtanh.pop %v785
    %v787 = vmul.f32 %v786, 0.5
    %v788 = vadd.f32 %v787, 0.5
    %v789 = vmul.f32 %v788, %v463
    %791 = vrot.lane.b32.xlu0 %v786, 64
    %v792 = vpop.permute.xlu0 %791
    %v794 = vmul.f32 %v788, %v792
    %796 = vrot.lane.b32.xlu0 %v794, 32
    %v797 = vpop.permute.xlu0 %796
    %v799 = vadd.f32 %v789, %v797
    %v800 = vtanh.pop %v799
    %802 = vrot.lane.b32.xlu0 %v800, 64
    %v803 = vpop.permute.xlu0 %802
    %v805 = vmul.f32 %v788, %v803
    %807 = vrot.lane.b32.xlu0 %v805, 32
    %v808 = vpop.permute.xlu0 %807
    %v809 = vsel %vm123, %v808, 0
    %811 = vmatprep.subr.mxu0 0.0
    %812 = vmatpush1.msra.mxu0 %v101
    %813 = vmatprep.subr.mxu0 0.0
    %814 = vmatpush1.msra.mxu0 %v102
    %815 = vmatprep.subr.mxu0 0.0
    %816 = vmatpush1.msra.mxu0 %v103
    %817 = vmatprep.subr.mxu0 0.0
    %818 = vmatpush1.msra.mxu0 %v104
    %819 = vmatprep.subr.mxu0 0.0
    %820 = vmatpush1.msra.mxu0 0.0
    %821 = vmatprep.subr.mxu0 0.0
    %822 = vmatpush1.msra.mxu0 0.0
    %823 = vmatprep.subr.mxu0 0.0
    %824 = vmatpush1.msra.mxu0 0.0
    %825 = vmatprep.subr.mxu0 0.0
    %826 = vmatpush1.msra.mxu0 0.0
    %827 = vmatprep.subr.mxu0 0.0
    %828 = vmatpush1.msra.mxu0 0.0
    %829 = vmatprep.subr.mxu0 0.0
    %830 = vmatpush1.msra.mxu0 0.0
    %831 = vmatprep.subr.mxu0 0.0
    %832 = vmatpush1.msra.mxu0 0.0
    %833 = vmatprep.subr.mxu0 0.0
    %834 = vmatpush1.msra.mxu0 0.0
    %835 = vmatprep.subr.mxu0 0.0
    %836 = vmatpush1.msra.mxu0 0.0
    %837 = vmatprep.subr.mxu0 0.0
    %838 = vmatpush1.msra.mxu0 0.0
    %839 = vmatprep.subr.mxu0 0.0
    %840 = vmatpush1.msra.mxu0 0.0
    %841 = vmatprep.subr.mxu0 0.0
    %842 = vmatpush1.msra.mxu0 0.0
    %843 = vmatprep.subr.mxu0 0.0
    %844 = vmatpush1.msra.mxu0 0.0
    %845 = vmatprep.subr.mxu0 0.0
    %846 = vmatpush1.msra.mxu0 0.0
    %847 = vmatprep.subr.mxu0 0.0
    %848 = vmatpush1.msra.mxu0 0.0
    %849 = vmatprep.subr.mxu0 0.0
    %850 = vmatpush1.msra.mxu0 0.0
    %851 = vmatprep.subr.mxu0 0.0
    %852 = vmatpush1.msra.mxu0 0.0
    %853 = vmatprep.subr.mxu0 0.0
    %854 = vmatpush1.msra.mxu0 0.0
    %855 = vmatprep.subr.mxu0 0.0
    %856 = vmatpush1.msra.mxu0 0.0
    %857 = vmatprep.subr.mxu0 0.0
    %858 = vmatpush1.msra.mxu0 0.0
    %859 = vmatprep.subr.mxu0 0.0
    %860 = vmatpush1.msra.mxu0 0.0
    %861 = vmatprep.subr.mxu0 0.0
    %862 = vmatpush1.msra.mxu0 0.0
    %863 = vmatprep.subr.mxu0 0.0
    %864 = vmatpush1.msra.mxu0 0.0
    %865 = vmatprep.subr.mxu0 0.0
    %866 = vmatpush1.msra.mxu0 0.0
    %867 = vmatprep.subr.mxu0 0.0
    %868 = vmatpush1.msra.mxu0 0.0
    %869 = vmatprep.subr.mxu0 0.0
    %870 = vmatpush1.msra.mxu0 0.0
    %871 = vmatprep.subr.mxu0 0.0
    %872 = vmatpush1.msra.mxu0 0.0
    %873 = vmatprep.subr.mxu0 0.0
    %874 = vmatpush1.msra.mxu0 0.0
    %875 = vmatprep.mubr.f32.mxu0 0.0
    %876 = vmatmul.mubr.f32.gmra.mrb[0].mxu0 %v809
    %v877 = vpop.f32.mrb[0].mxu0
    %v878 = vadd.f32 %v121, %v877
    %v879 = vpop.f32.mrb[0].mxu0
    %880 = vdwg.mxu0
    %881 = vmatprep.subr.mxu0 0.0
    %882 = vmatpush1.msra.mxu0 %v105
    %883 = vmatprep.subr.mxu0 0.0
    %884 = vmatpush1.msra.mxu0 %v106
    %885 = vmatprep.subr.mxu0 0.0
    %886 = vmatpush1.msra.mxu0 %v107
    %887 = vmatprep.subr.mxu0 0.0
    %888 = vmatpush1.msra.mxu0 %v108
    %889 = vmatprep.subr.mxu0 0.0
    %890 = vmatpush1.msra.mxu0 0.0
    %891 = vmatprep.subr.mxu0 0.0
    %892 = vmatpush1.msra.mxu0 0.0
    %893 = vmatprep.subr.mxu0 0.0
    %894 = vmatpush1.msra.mxu0 0.0
    %895 = vmatprep.subr.mxu0 0.0
    %896 = vmatpush1.msra.mxu0 0.0
    %897 = vmatprep.subr.mxu0 0.0
    %898 = vmatpush1.msra.mxu0 0.0
    %899 = vmatprep.subr.mxu0 0.0
    %900 = vmatpush1.msra.mxu0 0.0
    %901 = vmatprep.subr.mxu0 0.0
    %902 = vmatpush1.msra.mxu0 0.0
    %903 = vmatprep.subr.mxu0 0.0
    %904 = vmatpush1.msra.mxu0 0.0
    %905 = vmatprep.subr.mxu0 0.0
    %906 = vmatpush1.msra.mxu0 0.0
    %907 = vmatprep.subr.mxu0 0.0
    %908 = vmatpush1.msra.mxu0 0.0
    %909 = vmatprep.subr.mxu0 0.0
    %910 = vmatpush1.msra.mxu0 0.0
    %911 = vmatprep.subr.mxu0 0.0
    %912 = vmatpush1.msra.mxu0 0.0
    %913 = vmatprep.subr.mxu0 0.0
    %914 = vmatpush1.msra.mxu0 0.0
    %915 = vmatprep.subr.mxu0 0.0
    %916 = vmatpush1.msra.mxu0 0.0
    %917 = vmatprep.subr.mxu0 0.0
    %918 = vmatpush1.msra.mxu0 0.0
    %919 = vmatprep.subr.mxu0 0.0
    %920 = vmatpush1.msra.mxu0 0.0
    %921 = vmatprep.subr.mxu0 0.0
    %922 = vmatpush1.msra.mxu0 0.0
    %923 = vmatprep.subr.mxu0 0.0
    %924 = vmatpush1.msra.mxu0 0.0
    %925 = vmatprep.subr.mxu0 0.0
    %926 = vmatpush1.msra.mxu0 0.0
    %927 = vmatprep.subr.mxu0 0.0
    %928 = vmatpush1.msra.mxu0 0.0
    %929 = vmatprep.subr.mxu0 0.0
    %930 = vmatpush1.msra.mxu0 0.0
    %931 = vmatprep.subr.mxu0 0.0
    %932 = vmatpush1.msra.mxu0 0.0
    %933 = vmatprep.subr.mxu0 0.0
    %934 = vmatpush1.msra.mxu0 0.0
    %935 = vmatprep.subr.mxu0 0.0
    %936 = vmatpush1.msra.mxu0 0.0
    %937 = vmatprep.subr.mxu0 0.0
    %938 = vmatpush1.msra.mxu0 0.0
    %939 = vmatprep.subr.mxu0 0.0
    %940 = vmatpush1.msra.mxu0 0.0
    %941 = vmatprep.subr.mxu0 0.0
    %942 = vmatpush1.msra.mxu0 0.0
    %943 = vmatprep.subr.mxu0 0.0
    %944 = vmatpush1.msra.mxu0 0.0
    %945 = vmatprep.mubr.f32.mxu0 0.0
    %946 = vmatmul.mubr.f32.gmra.mrb[0].mxu0 %v643
    %v947 = vpop.f32.mrb[0].mxu0
    %v948 = vadd.f32 0.0, %v947
    %v949 = vpop.f32.mrb[0].mxu0
    %950 = vdwg.mxu0
    %v951 = vadd.f32 %v878, %v948
    %v952 = vtanh.pop %v951
    %v953 = vmul.f32 %v952, 0.5
    %v954 = vadd.f32 %v953, 0.5
    %v955 = vmul.f32 %v954, %v633
    %957 = vrot.lane.b32.xlu0 %v952, 64
    %v958 = vpop.permute.xlu0 %957
    %v960 = vmul.f32 %v954, %v958
    %962 = vrot.lane.b32.xlu0 %v960, 32
    %v963 = vpop.permute.xlu0 %962
    %v965 = vadd.f32 %v955, %v963
    %v966 = vtanh.pop %v965
    %968 = vrot.lane.b32.xlu0 %v966, 64
    %v969 = vpop.permute.xlu0 %968
    %v971 = vmul.f32 %v954, %v969
    %973 = vrot.lane.b32.xlu0 %v971, 32
    %v974 = vpop.permute.xlu0 %973
    %v975 = vsel %vm123, %v974, 0
    %977 = vmatprep.subr.mxu0 0.0
    %978 = vmatpush1.msra.mxu0 %v93
    %979 = vmatprep.subr.mxu0 0.0
    %980 = vmatpush1.msra.mxu0 %v94
    %981 = vmatprep.subr.mxu0 0.0
    %982 = vmatpush1.msra.mxu0 %v95
    %983 = vmatprep.subr.mxu0 0.0
    %984 = vmatpush1.msra.mxu0 %v96
    %985 = vmatprep.subr.mxu0 0.0
    %986 = vmatpush1.msra.mxu0 0.0
    %987 = vmatprep.subr.mxu0 0.0
    %988 = vmatpush1.msra.mxu0 0.0
    %989 = vmatprep.subr.mxu0 0.0
    %990 = vmatpush1.msra.mxu0 0.0
    %991 = vmatprep.subr.mxu0 0.0
    %992 = vmatpush1.msra.mxu0 0.0
    %993 = vmatprep.subr.mxu0 0.0
    %994 = vmatpush1.msra.mxu0 0.0
    %995 = vmatprep.subr.mxu0 0.0
    %996 = vmatpush1.msra.mxu0 0.0
    %997 = vmatprep.subr.mxu0 0.0
    %998 = vmatpush1.msra.mxu0 0.0
    %999 = vmatprep.subr.mxu0 0.0
    %1000 = vmatpush1.msra.mxu0 0.0
    %1001 = vmatprep.subr.mxu0 0.0
    %1002 = vmatpush1.msra.mxu0 0.0
    %1003 = vmatprep.subr.mxu0 0.0
    %1004 = vmatpush1.msra.mxu0 0.0
    %1005 = vmatprep.subr.mxu0 0.0
    %1006 = vmatpush1.msra.mxu0 0.0
    %1007 = vmatprep.subr.mxu0 0.0
    %1008 = vmatpush1.msra.mxu0 0.0
    %1009 = vmatprep.subr.mxu0 0.0
    %1010 = vmatpush1.msra.mxu0 0.0
    %1011 = vmatprep.subr.mxu0 0.0
    %1012 = vmatpush1.msra.mxu0 0.0
    %1013 = vmatprep.subr.mxu0 0.0
    %1014 = vmatpush1.msra.mxu0 0.0
    %1015 = vmatprep.subr.mxu0 0.0
    %1016 = vmatpush1.msra.mxu0 0.0
    %1017 = vmatprep.subr.mxu0 0.0
    %1018 = vmatpush1.msra.mxu0 0.0
    %1019 = vmatprep.subr.mxu0 0.0
    %1020 = vmatpush1.msra.mxu0 0.0
    %1021 = vmatprep.subr.mxu0 0.0
    %1022 = vmatpush1.msra.mxu0 0.0
    %1023 = vmatprep.subr.mxu0 0.0
    %1024 = vmatpush1.msra.mxu0 0.0
    %1025 = vmatprep.subr.mxu0 0.0
    %1026 = vmatpush1.msra.mxu0 0.0
    %1027 = vmatprep.subr.mxu0 0.0
    %1028 = vmatpush1.msra.mxu0 0.0
    %1029 = vmatprep.subr.mxu0 0.0
    %1030 = vmatpush1.msra.mxu0 0.0
    %1031 = vmatprep.subr.mxu0 0.0
    %1032 = vmatpush1.msra.mxu0 0.0
    %1033 = vmatprep.subr.mxu0 0.0
    %1034 = vmatpush1.msra.mxu0 0.0
    %1035 = vmatprep.subr.mxu0 0.0
    %1036 = vmatpush1.msra.mxu0 0.0
    %1037 = vmatprep.subr.mxu0 0.0
    %1038 = vmatpush1.msra.mxu0 0.0
    %1039 = vmatprep.subr.mxu0 0.0
    %1040 = vmatpush1.msra.mxu0 0.0
    %1041 = vmatprep.mubr.f32.mxu0 0.0
    %1042 = vmatmul.mubr.f32.gmra.mrb[0].mxu0 %v975
    %v1043 = vpop.f32.mrb[0].mxu0
    %v1044 = vadd.f32 %v114, %v1043
    %v1045 = vpop.f32.mrb[0].mxu0
    %1046 = vdwg.mxu0
    %1047 = vmatprep.subr.mxu0 0.0
    %1048 = vmatpush1.msra.mxu0 %v97
    %1049 = vmatprep.subr.mxu0 0.0
    %1050 = vmatpush1.msra.mxu0 %v98
    %1051 = vmatprep.subr.mxu0 0.0
    %1052 = vmatpush1.msra.mxu0 %v99
    %1053 = vmatprep.subr.mxu0 0.0
    %1054 = vmatpush1.msra.mxu0 %v100
    %1055 = vmatprep.subr.mxu0 0.0
    %1056 = vmatpush1.msra.mxu0 0.0
    %1057 = vmatprep.subr.mxu0 0.0
    %1058 = vmatpush1.msra.mxu0 0.0
    %1059 = vmatprep.subr.mxu0 0.0
    %1060 = vmatpush1.msra.mxu0 0.0
    %1061 = vmatprep.subr.mxu0 0.0
    %1062 = vmatpush1.msra.mxu0 0.0
    %1063 = vmatprep.subr.mxu0 0.0
    %1064 = vmatpush1.msra.mxu0 0.0
    %1065 = vmatprep.subr.mxu0 0.0
    %1066 = vmatpush1.msra.mxu0 0.0
    %1067 = vmatprep.subr.mxu0 0.0
    %1068 = vmatpush1.msra.mxu0 0.0
    %1069 = vmatprep.subr.mxu0 0.0
    %1070 = vmatpush1.msra.mxu0 0.0
    %1071 = vmatprep.subr.mxu0 0.0
    %1072 = vmatpush1.msra.mxu0 0.0
    %1073 = vmatprep.subr.mxu0 0.0
    %1074 = vmatpush1.msra.mxu0 0.0
    %1075 = vmatprep.subr.mxu0 0.0
    %1076 = vmatpush1.msra.mxu0 0.0
    %1077 = vmatprep.subr.mxu0 0.0
    %1078 = vmatpush1.msra.mxu0 0.0
    %1079 = vmatprep.subr.mxu0 0.0
    %1080 = vmatpush1.msra.mxu0 0.0
    %1081 = vmatprep.subr.mxu0 0.0
    %1082 = vmatpush1.msra.mxu0 0.0
    %1083 = vmatprep.subr.mxu0 0.0
    %1084 = vmatpush1.msra.mxu0 0.0
    %1085 = vmatprep.subr.mxu0 0.0
    %1086 = vmatpush1.msra.mxu0 0.0
    %1087 = vmatprep.subr.mxu0 0.0
    %1088 = vmatpush1.msra.mxu0 0.0
    %1089 = vmatprep.subr.mxu0 0.0
    %1090 = vmatpush1.msra.mxu0 0.0
    %1091 = vmatprep.subr.mxu0 0.0
    %1092 = vmatpush1.msra.mxu0 0.0
    %1093 = vmatprep.subr.mxu0 0.0
    %1094 = vmatpush1.msra.mxu0 0.0
    %1095 = vmatprep.subr.mxu0 0.0
    %1096 = vmatpush1.msra.mxu0 0.0
    %1097 = vmatprep.subr.mxu0 0.0
    %1098 = vmatpush1.msra.mxu0 0.0
    %1099 = vmatprep.subr.mxu0 0.0
    %1100 = vmatpush1.msra.mxu0 0.0
    %1101 = vmatprep.subr.mxu0 0.0
    %1102 = vmatpush1.msra.mxu0 0.0
    %1103 = vmatprep.subr.mxu0 0.0
    %1104 = vmatpush1.msra.mxu0 0.0
    %1105 = vmatprep.subr.mxu0 0.0
    %1106 = vmatpush1.msra.mxu0 0.0
    %1107 = vmatprep.subr.mxu0 0.0
    %1108 = vmatpush1.msra.mxu0 0.0
    %1109 = vmatprep.subr.mxu0 0.0
    %1110 = vmatpush1.msra.mxu0 0.0
    %1111 = vmatprep.mubr.f32.mxu0 0.0
    %1112 = vmatmul.mubr.f32.gmra.mrb[0].mxu0 %v809
    %v1113 = vpop.f32.mrb[0].mxu0
    %v1114 = vadd.f32 0.0, %v1113
    %v1115 = vpop.f32.mrb[0].mxu0
    %1116 = vdwg.mxu0
    %v1117 = vadd.f32 %v1044, %v1114
    %v1118 = vtanh.pop %v1117
    %v1119 = vmul.f32 %v1118, 0.5
    %v1120 = vadd.f32 %v1119, 0.5
    %v1121 = vmul.f32 %v1120, %v799
    %1123 = vrot.lane.b32.xlu0 %v1118, 64
    %v1124 = vpop.permute.xlu0 %1123
    %v1126 = vmul.f32 %v1120, %v1124
    %1128 = vrot.lane.b32.xlu0 %v1126, 32
    %v1129 = vpop.permute.xlu0 %1128
    %v1131 = vadd.f32 %v1121, %v1129
    %v1132 = vtanh.pop %v1131
    %1134 = vrot.lane.b32.xlu0 %v1132, 64
    %v1135 = vpop.permute.xlu0 %1134
    %v1137 = vmul.f32 %v1120, %v1135
    %1139 = vrot.lane.b32.xlu0 %v1137, 32
    %v1140 = vpop.permute.xlu0 %1139
    %v1141 = vsel %vm123, %v1140, 0
    %1143 = vmatprep.subr.mxu0 0.0
    %1144 = vmatpush1.msra.mxu0 %v101
    %1145 = vmatprep.subr.mxu0 0.0
    %1146 = vmatpush1.msra.mxu0 %v102
    %1147 = vmatprep.subr.mxu0 0.0
    %1148 = vmatpush1.msra.mxu0 %v103
    %1149 = vmatprep.subr.mxu0 0.0
    %1150 = vmatpush1.msra.mxu0 %v104
    %1151 = vmatprep.subr.mxu0 0.0
    %1152 = vmatpush1.msra.mxu0 0.0
    %1153 = vmatprep.subr.mxu0 0.0
    %1154 = vmatpush1.msra.mxu0 0.0
    %1155 = vmatprep.subr.mxu0 0.0
    %1156 = vmatpush1.msra.mxu0 0.0
    %1157 = vmatprep.subr.mxu0 0.0
    %1158 = vmatpush1.msra.mxu0 0.0
    %1159 = vmatprep.subr.mxu0 0.0
    %1160 = vmatpush1.msra.mxu0 0.0
    %1161 = vmatprep.subr.mxu0 0.0
    %1162 = vmatpush1.msra.mxu0 0.0
    %1163 = vmatprep.subr.mxu0 0.0
    %1164 = vmatpush1.msra.mxu0 0.0
    %1165 = vmatprep.subr.mxu0 0.0
    %1166 = vmatpush1.msra.mxu0 0.0
    %1167 = vmatprep.subr.mxu0 0.0
    %1168 = vmatpush1.msra.mxu0 0.0
    %1169 = vmatprep.subr.mxu0 0.0
    %1170 = vmatpush1.msra.mxu0 0.0
    %1171 = vmatprep.subr.mxu0 0.0
    %1172 = vmatpush1.msra.mxu0 0.0
    %1173 = vmatprep.subr.mxu0 0.0
    %1174 = vmatpush1.msra.mxu0 0.0
    %1175 = vmatprep.subr.mxu0 0.0
    %1176 = vmatpush1.msra.mxu0 0.0
    %1177 = vmatprep.subr.mxu0 0.0
    %1178 = vmatpush1.msra.mxu0 0.0
    %1179 = vmatprep.subr.mxu0 0.0
    %1180 = vmatpush1.msra.mxu0 0.0
    %1181 = vmatprep.subr.mxu0 0.0
    %1182 = vmatpush1.msra.mxu0 0.0
    %1183 = vmatprep.subr.mxu0 0.0
    %1184 = vmatpush1.msra.mxu0 0.0
    %1185 = vmatprep.subr.mxu0 0.0
    %1186 = vmatpush1.msra.mxu0 0.0
    %1187 = vmatprep.subr.mxu0 0.0
    %1188 = vmatpush1.msra.mxu0 0.0
    %1189 = vmatprep.subr.mxu0 0.0
    %1190 = vmatpush1.msra.mxu0 0.0
    %1191 = vmatprep.subr.mxu0 0.0
    %1192 = vmatpush1.msra.mxu0 0.0
    %1193 = vmatprep.subr.mxu0 0.0
    %1194 = vmatpush1.msra.mxu0 0.0
    %1195 = vmatprep.subr.mxu0 0.0
    %1196 = vmatpush1.msra.mxu0 0.0
    %1197 = vmatprep.subr.mxu0 0.0
    %1198 = vmatpush1.msra.mxu0 0.0
    %1199 = vmatprep.subr.mxu0 0.0
    %1200 = vmatpush1.msra.mxu0 0.0
    %1201 = vmatprep.subr.mxu0 0.0
    %1202 = vmatpush1.msra.mxu0 0.0
    %1203 = vmatprep.subr.mxu0 0.0
    %1204 = vmatpush1.msra.mxu0 0.0
    %1205 = vmatprep.subr.mxu0 0.0
    %1206 = vmatpush1.msra.mxu0 0.0
    %1207 = vmatprep.mubr.f32.mxu0 0.0
    %1208 = vmatmul.mubr.f32.gmra.mrb[0].mxu0 %v1141
    %v1209 = vpop.f32.mrb[0].mxu0
    %v1210 = vadd.f32 %v121, %v1209
    %v1211 = vpop.f32.mrb[0].mxu0
    %1212 = vdwg.mxu0
    %1213 = vmatprep.subr.mxu0 0.0
    %1214 = vmatpush1.msra.mxu0 %v105
    %1215 = vmatprep.subr.mxu0 0.0
    %1216 = vmatpush1.msra.mxu0 %v106
    %1217 = vmatprep.subr.mxu0 0.0
    %1218 = vmatpush1.msra.mxu0 %v107
    %1219 = vmatprep.subr.mxu0 0.0
    %1220 = vmatpush1.msra.mxu0 %v108
    %1221 = vmatprep.subr.mxu0 0.0
    %1222 = vmatpush1.msra.mxu0 0.0
    %1223 = vmatprep.subr.mxu0 0.0
    %1224 = vmatpush1.msra.mxu0 0.0
    %1225 = vmatprep.subr.mxu0 0.0
    %1226 = vmatpush1.msra.mxu0 0.0
    %1227 = vmatprep.subr.mxu0 0.0
    %1228 = vmatpush1.msra.mxu0 0.0
    %1229 = vmatprep.subr.mxu0 0.0
    %1230 = vmatpush1.msra.mxu0 0.0
    %1231 = vmatprep.subr.mxu0 0.0
    %1232 = vmatpush1.msra.mxu0 0.0
    %1233 = vmatprep.subr.mxu0 0.0
    %1234 = vmatpush1.msra.mxu0 0.0
    %1235 = vmatprep.subr.mxu0 0.0
    %1236 = vmatpush1.msra.mxu0 0.0
    %1237 = vmatprep.subr.mxu0 0.0
    %1238 = vmatpush1.msra.mxu0 0.0
    %1239 = vmatprep.subr.mxu0 0.0
    %1240 = vmatpush1.msra.mxu0 0.0
    %1241 = vmatprep.subr.mxu0 0.0
    %1242 = vmatpush1.msra.mxu0 0.0
    %1243 = vmatprep.subr.mxu0 0.0
    %1244 = vmatpush1.msra.mxu0 0.0
    %1245 = vmatprep.subr.mxu0 0.0
    %1246 = vmatpush1.msra.mxu0 0.0
    %1247 = vmatprep.subr.mxu0 0.0
    %1248 = vmatpush1.msra.mxu0 0.0
    %1249 = vmatprep.subr.mxu0 0.0
    %1250 = vmatpush1.msra.mxu0 0.0
    %1251 = vmatprep.subr.mxu0 0.0
    %1252 = vmatpush1.msra.mxu0 0.0
    %1253 = vmatprep.subr.mxu0 0.0
    %1254 = vmatpush1.msra.mxu0 0.0
    %1255 = vmatprep.subr.mxu0 0.0
    %1256 = vmatpush1.msra.mxu0 0.0
    %1257 = vmatprep.subr.mxu0 0.0
    %1258 = vmatpush1.msra.mxu0 0.0
    %1259 = vmatprep.subr.mxu0 0.0
    %1260 = vmatpush1.msra.mxu0 0.0
    %1261 = vmatprep.subr.mxu0 0.0
    %1262 = vmatpush1.msra.mxu0 0.0
    %1263 = vmatprep.subr.mxu0 0.0
    %1264 = vmatpush1.msra.mxu0 0.0
    %1265 = vmatprep.subr.mxu0 0.0
    %1266 = vmatpush1.msra.mxu0 0.0
    %1267 = vmatprep.subr.mxu0 0.0
    %1268 = vmatpush1.msra.mxu0 0.0
    %1269 = vmatprep.subr.mxu0 0.0
    %1270 = vmatpush1.msra.mxu0 0.0
    %1271 = vmatprep.subr.mxu0 0.0
    %1272 = vmatpush1.msra.mxu0 0.0
    %1273 = vmatprep.subr.mxu0 0.0
    %1274 = vmatpush1.msra.mxu0 0.0
    %1275 = vmatprep.subr.mxu0 0.0
    %1276 = vmatpush1.msra.mxu0 0.0
    %1277 = vmatprep.mubr.f32.mxu0 0.0
    %1278 = vmatmul.mubr.f32.gmra.mrb[0].mxu0 %v975
    %v1279 = vpop.f32.mrb[0].mxu0
    %v1280 = vadd.f32 0.0, %v1279
    %v1281 = vpop.f32.mrb[0].mxu0
    %1282 = vdwg.mxu0
    %v1283 = vadd.f32 %v1210, %v1280
    %v1284 = vtanh.pop %v1283
    %v1285 = vmul.f32 %v1284, 0.5
    %v1286 = vadd.f32 %v1285, 0.5
    %v1287 = vmul.f32 %v1286, %v965
    %1289 = vrot.lane.b32.xlu0 %v1284, 64
    %v1290 = vpop.permute.xlu0 %1289
    %v1292 = vmul.f32 %v1286, %v1290
    %1294 = vrot.lane.b32.xlu0 %v1292, 32
    %v1295 = vpop.permute.xlu0 %1294
    %v1297 = vadd.f32 %v1287, %v1295
    %v1298 = vtanh.pop %v1297
    %1300 = vrot.lane.b32.xlu0 %v1298, 64
    %v1301 = vpop.permute.xlu0 %1300
    %v1303 = vmul.f32 %v1286, %v1301
    %1305 = vrot.lane.b32.xlu0 %v1303, 32
    %v1306 = vpop.permute.xlu0 %1305
    %v1307 = vsel %vm123, %v1306, 0
    %1309 = vmatprep.subr.mxu0 0.0
    %1310 = vmatpush1.msra.mxu0 %v93
    %1311 = vmatprep.subr.mxu0 0.0
    %1312 = vmatpush1.msra.mxu0 %v94
    %1313 = vmatprep.subr.mxu0 0.0
    %1314 = vmatpush1.msra.mxu0 %v95
    %1315 = vmatprep.subr.mxu0 0.0
    %1316 = vmatpush1.msra.mxu0 %v96
    %1317 = vmatprep.subr.mxu0 0.0
    %1318 = vmatpush1.msra.mxu0 0.0
    %1319 = vmatprep.subr.mxu0 0.0
    %1320 = vmatpush1.msra.mxu0 0.0
    %1321 = vmatprep.subr.mxu0 0.0
    %1322 = vmatpush1.msra.mxu0 0.0
    %1323 = vmatprep.subr.mxu0 0.0
    %1324 = vmatpush1.msra.mxu0 0.0
    %1325 = vmatprep.subr.mxu0 0.0
    %1326 = vmatpush1.msra.mxu0 0.0
    %1327 = vmatprep.subr.mxu0 0.0
    %1328 = vmatpush1.msra.mxu0 0.0
    %1329 = vmatprep.subr.mxu0 0.0
    %1330 = vmatpush1.msra.mxu0 0.0
    %1331 = vmatprep.subr.mxu0 0.0
    %1332 = vmatpush1.msra.mxu0 0.0
    %1333 = vmatprep.subr.mxu0 0.0
    %1334 = vmatpush1.msra.mxu0 0.0
    %1335 = vmatprep.subr.mxu0 0.0
    %1336 = vmatpush1.msra.mxu0 0.0
    %1337 = vmatprep.subr.mxu0 0.0
    %1338 = vmatpush1.msra.mxu0 0.0
    %1339 = vmatprep.subr.mxu0 0.0
    %1340 = vmatpush1.msra.mxu0 0.0
    %1341 = vmatprep.subr.mxu0 0.0
    %1342 = vmatpush1.msra.mxu0 0.0
    %1343 = vmatprep.subr.mxu0 0.0
    %1344 = vmatpush1.msra.mxu0 0.0
    %1345 = vmatprep.subr.mxu0 0.0
    %1346 = vmatpush1.msra.mxu0 0.0
    %1347 = vmatprep.subr.mxu0 0.0
    %1348 = vmatpush1.msra.mxu0 0.0
    %1349 = vmatprep.subr.mxu0 0.0
    %1350 = vmatpush1.msra.mxu0 0.0
    %1351 = vmatprep.subr.mxu0 0.0
    %1352 = vmatpush1.msra.mxu0 0.0
    %1353 = vmatprep.subr.mxu0 0.0
    %1354 = vmatpush1.msra.mxu0 0.0
    %1355 = vmatprep.subr.mxu0 0.0
    %1356 = vmatpush1.msra.mxu0 0.0
    %1357 = vmatprep.subr.mxu0 0.0
    %1358 = vmatpush1.msra.mxu0 0.0
    %1359 = vmatprep.subr.mxu0 0.0
    %1360 = vmatpush1.msra.mxu0 0.0
    %1361 = vmatprep.subr.mxu0 0.0
    %1362 = vmatpush1.msra.mxu0 0.0
    %1363 = vmatprep.subr.mxu0 0.0
    %1364 = vmatpush1.msra.mxu0 0.0
    %1365 = vmatprep.subr.mxu0 0.0
    %1366 = vmatpush1.msra.mxu0 0.0
    %1367 = vmatprep.subr.mxu0 0.0
    %1368 = vmatpush1.msra.mxu0 0.0
    %1369 = vmatprep.subr.mxu0 0.0
    %1370 = vmatpush1.msra.mxu0 0.0
    %1371 = vmatprep.subr.mxu0 0.0
    %1372 = vmatpush1.msra.mxu0 0.0
    %1373 = vmatprep.mubr.f32.mxu0 0.0
    %1374 = vmatmul.mubr.f32.gmra.mrb[0].mxu0 %v1307
    %v1375 = vpop.f32.mrb[0].mxu0
    %v1376 = vadd.f32 %v114, %v1375
    %v1377 = vpop.f32.mrb[0].mxu0
    %1378 = vdwg.mxu0
    %1379 = vmatprep.subr.mxu0 0.0
    %1380 = vmatpush1.msra.mxu0 %v97
    %1381 = vmatprep.subr.mxu0 0.0
    %1382 = vmatpush1.msra.mxu0 %v98
    %1383 = vmatprep.subr.mxu0 0.0
    %1384 = vmatpush1.msra.mxu0 %v99
    %1385 = vmatprep.subr.mxu0 0.0
    %1386 = vmatpush1.msra.mxu0 %v100
    %1387 = vmatprep.subr.mxu0 0.0
    %1388 = vmatpush1.msra.mxu0 0.0
    %1389 = vmatprep.subr.mxu0 0.0
    %1390 = vmatpush1.msra.mxu0 0.0
    %1391 = vmatprep.subr.mxu0 0.0
    %1392 = vmatpush1.msra.mxu0 0.0
    %1393 = vmatprep.subr.mxu0 0.0
    %1394 = vmatpush1.msra.mxu0 0.0
    %1395 = vmatprep.subr.mxu0 0.0
    %1396 = vmatpush1.msra.mxu0 0.0
    %1397 = vmatprep.subr.mxu0 0.0
    %1398 = vmatpush1.msra.mxu0 0.0
    %1399 = vmatprep.subr.mxu0 0.0
    %1400 = vmatpush1.msra.mxu0 0.0
    %1401 = vmatprep.subr.mxu0 0.0
    %1402 = vmatpush1.msra.mxu0 0.0
    %1403 = vmatprep.subr.mxu0 0.0
    %1404 = vmatpush1.msra.mxu0 0.0
    %1405 = vmatprep.subr.mxu0 0.0
    %1406 = vmatpush1.msra.mxu0 0.0
    %1407 = vmatprep.subr.mxu0 0.0
    %1408 = vmatpush1.msra.mxu0 0.0
    %1409 = vmatprep.subr.mxu0 0.0
    %1410 = vmatpush1.msra.mxu0 0.0
    %1411 = vmatprep.subr.mxu0 0.0
    %1412 = vmatpush1.msra.mxu0 0.0
    %1413 = vmatprep.subr.mxu0 0.0
    %1414 = vmatpush1.msra.mxu0 0.0
    %1415 = vmatprep.subr.mxu0 0.0
    %1416 = vmatpush1.msra.mxu0 0.0
    %1417 = vmatprep.subr.mxu0 0.0
    %1418 = vmatpush1.msra.mxu0 0.0
    %1419 = vmatprep.subr.mxu0 0.0
    %1420 = vmatpush1.msra.mxu0 0.0
    %1421 = vmatprep.subr.mxu0 0.0
    %1422 = vmatpush1.msra.mxu0 0.0
    %1423 = vmatprep.subr.mxu0 0.0
    %1424 = vmatpush1.msra.mxu0 0.0
    %1425 = vmatprep.subr.mxu0 0.0
    %1426 = vmatpush1.msra.mxu0 0.0
    %1427 = vmatprep.subr.mxu0 0.0
    %1428 = vmatpush1.msra.mxu0 0.0
    %1429 = vmatprep.subr.mxu0 0.0
    %1430 = vmatpush1.msra.mxu0 0.0
    %1431 = vmatprep.subr.mxu0 0.0
    %1432 = vmatpush1.msra.mxu0 0.0
    %1433 = vmatprep.subr.mxu0 0.0
    %1434 = vmatpush1.msra.mxu0 0.0
    %1435 = vmatprep.subr.mxu0 0.0
    %1436 = vmatpush1.msra.mxu0 0.0
    %1437 = vmatprep.subr.mxu0 0.0
    %1438 = vmatpush1.msra.mxu0 0.0
    %1439 = vmatprep.subr.mxu0 0.0
    %1440 = vmatpush1.msra.mxu0 0.0
    %1441 = vmatprep.subr.mxu0 0.0
    %1442 = vmatpush1.msra.mxu0 0.0
    %1443 = vmatprep.mubr.f32.mxu0 0.0
    %1444 = vmatmul.mubr.f32.gmra.mrb[0].mxu0 %v1141
    %v1445 = vpop.f32.mrb[0].mxu0
    %v1446 = vadd.f32 0.0, %v1445
    %v1447 = vpop.f32.mrb[0].mxu0
    %1448 = vdwg.mxu0
    %v1449 = vadd.f32 %v1376, %v1446
    %v1450 = vtanh.pop %v1449
    %v1451 = vmul.f32 %v1450, 0.5
    %v1452 = vadd.f32 %v1451, 0.5
    %v1453 = vmul.f32 %v1452, %v1131
    %1455 = vrot.lane.b32.xlu0 %v1450, 64
    %v1456 = vpop.permute.xlu0 %1455
    %v1458 = vmul.f32 %v1452, %v1456
    %1460 = vrot.lane.b32.xlu0 %v1458, 32
    %v1461 = vpop.permute.xlu0 %1460
    %v1463 = vadd.f32 %v1453, %v1461
    %v1464 = vtanh.pop %v1463
    %1466 = vrot.lane.b32.xlu0 %v1464, 64
    %v1467 = vpop.permute.xlu0 %1466
    %v1469 = vmul.f32 %v1452, %v1467
    %1471 = vrot.lane.b32.xlu0 %v1469, 32
    %v1472 = vpop.permute.xlu0 %1471
    %v1473 = vsel %vm123, %v1472, 0
    %1475 = vmatprep.subr.mxu0 0.0
    %1476 = vmatpush1.msra.mxu0 %v101
    %1477 = vmatprep.subr.mxu0 0.0
    %1478 = vmatpush1.msra.mxu0 %v102
    %1479 = vmatprep.subr.mxu0 0.0
    %1480 = vmatpush1.msra.mxu0 %v103
    %1481 = vmatprep.subr.mxu0 0.0
    %1482 = vmatpush1.msra.mxu0 %v104
    %1483 = vmatprep.subr.mxu0 0.0
    %1484 = vmatpush1.msra.mxu0 0.0
    %1485 = vmatprep.subr.mxu0 0.0
    %1486 = vmatpush1.msra.mxu0 0.0
    %1487 = vmatprep.subr.mxu0 0.0
    %1488 = vmatpush1.msra.mxu0 0.0
    %1489 = vmatprep.subr.mxu0 0.0
    %1490 = vmatpush1.msra.mxu0 0.0
    %1491 = vmatprep.subr.mxu0 0.0
    %1492 = vmatpush1.msra.mxu0 0.0
    %1493 = vmatprep.subr.mxu0 0.0
    %1494 = vmatpush1.msra.mxu0 0.0
    %1495 = vmatprep.subr.mxu0 0.0
    %1496 = vmatpush1.msra.mxu0 0.0
    %1497 = vmatprep.subr.mxu0 0.0
    %1498 = vmatpush1.msra.mxu0 0.0
    %1499 = vmatprep.subr.mxu0 0.0
    %1500 = vmatpush1.msra.mxu0 0.0
    %1501 = vmatprep.subr.mxu0 0.0
    %1502 = vmatpush1.msra.mxu0 0.0
    %1503 = vmatprep.subr.mxu0 0.0
    %1504 = vmatpush1.msra.mxu0 0.0
    %1505 = vmatprep.subr.mxu0 0.0
    %1506 = vmatpush1.msra.mxu0 0.0
    %1507 = vmatprep.subr.mxu0 0.0
    %1508 = vmatpush1.msra.mxu0 0.0
    %1509 = vmatprep.subr.mxu0 0.0
    %1510 = vmatpush1.msra.mxu0 0.0
    %1511 = vmatprep.subr.mxu0 0.0
    %1512 = vmatpush1.msra.mxu0 0.0
    %1513 = vmatprep.subr.mxu0 0.0
    %1514 = vmatpush1.msra.mxu0 0.0
    %1515 = vmatprep.subr.mxu0 0.0
    %1516 = vmatpush1.msra.mxu0 0.0
    %1517 = vmatprep.subr.mxu0 0.0
    %1518 = vmatpush1.msra.mxu0 0.0
    %1519 = vmatprep.subr.mxu0 0.0
    %1520 = vmatpush1.msra.mxu0 0.0
    %1521 = vmatprep.subr.mxu0 0.0
    %1522 = vmatpush1.msra.mxu0 0.0
    %1523 = vmatprep.subr.mxu0 0.0
    %1524 = vmatpush1.msra.mxu0 0.0
    %1525 = vmatprep.subr.mxu0 0.0
    %1526 = vmatpush1.msra.mxu0 0.0
    %1527 = vmatprep.subr.mxu0 0.0
    %1528 = vmatpush1.msra.mxu0 0.0
    %1529 = vmatprep.subr.mxu0 0.0
    %1530 = vmatpush1.msra.mxu0 0.0
    %1531 = vmatprep.subr.mxu0 0.0
    %1532 = vmatpush1.msra.mxu0 0.0
    %1533 = vmatprep.subr.mxu0 0.0
    %1534 = vmatpush1.msra.mxu0 0.0
    %1535 = vmatprep.subr.mxu0 0.0
    %1536 = vmatpush1.msra.mxu0 0.0
    %1537 = vmatprep.subr.mxu0 0.0
    %1538 = vmatpush1.msra.mxu0 0.0
    %1539 = vmatprep.mubr.f32.mxu0 0.0
    %1540 = vmatmul.mubr.f32.gmra.mrb[0].mxu0 %v1473
    %v1541 = vpop.f32.mrb[0].mxu0
    %v1542 = vadd.f32 %v121, %v1541
    %v1543 = vpop.f32.mrb[0].mxu0
    %1544 = vdwg.mxu0
    %1545 = vmatprep.subr.mxu0 0.0
    %1546 = vmatpush1.msra.mxu0 %v105
    %1547 = vmatprep.subr.mxu0 0.0
    %1548 = vmatpush1.msra.mxu0 %v106
    %1549 = vmatprep.subr.mxu0 0.0
    %1550 = vmatpush1.msra.mxu0 %v107
    %1551 = vmatprep.subr.mxu0 0.0
    %1552 = vmatpush1.msra.mxu0 %v108
    %1553 = vmatprep.subr.mxu0 0.0
    %1554 = vmatpush1.msra.mxu0 0.0
    %1555 = vmatprep.subr.mxu0 0.0
    %1556 = vmatpush1.msra.mxu0 0.0
    %1557 = vmatprep.subr.mxu0 0.0
    %1558 = vmatpush1.msra.mxu0 0.0
    %1559 = vmatprep.subr.mxu0 0.0
    %1560 = vmatpush1.msra.mxu0 0.0
    %1561 = vmatprep.subr.mxu0 0.0
    %1562 = vmatpush1.msra.mxu0 0.0
    %1563 = vmatprep.subr.mxu0 0.0
    %1564 = vmatpush1.msra.mxu0 0.0
    %1565 = vmatprep.subr.mxu0 0.0
    %1566 = vmatpush1.msra.mxu0 0.0
    %1567 = vmatprep.subr.mxu0 0.0
    %1568 = vmatpush1.msra.mxu0 0.0
    %1569 = vmatprep.subr.mxu0 0.0
    %1570 = vmatpush1.msra.mxu0 0.0
    %1571 = vmatprep.subr.mxu0 0.0
    %1572 = vmatpush1.msra.mxu0 0.0
    %1573 = vmatprep.subr.mxu0 0.0
    %1574 = vmatpush1.msra.mxu0 0.0
    %1575 = vmatprep.subr.mxu0 0.0
    %1576 = vmatpush1.msra.mxu0 0.0
    %1577 = vmatprep.subr.mxu0 0.0
    %1578 = vmatpush1.msra.mxu0 0.0
    %1579 = vmatprep.subr.mxu0 0.0
    %1580 = vmatpush1.msra.mxu0 0.0
    %1581 = vmatprep.subr.mxu0 0.0
    %1582 = vmatpush1.msra.mxu0 0.0
    %1583 = vmatprep.subr.mxu0 0.0
    %1584 = vmatpush1.msra.mxu0 0.0
    %1585 = vmatprep.subr.mxu0 0.0
    %1586 = vmatpush1.msra.mxu0 0.0
    %1587 = vmatprep.subr.mxu0 0.0
    %1588 = vmatpush1.msra.mxu0 0.0
    %1589 = vmatprep.subr.mxu0 0.0
    %1590 = vmatpush1.msra.mxu0 0.0
    %1591 = vmatprep.subr.mxu0 0.0
    %1592 = vmatpush1.msra.mxu0 0.0
    %1593 = vmatprep.subr.mxu0 0.0
    %1594 = vmatpush1.msra.mxu0 0.0
    %1595 = vmatprep.subr.mxu0 0.0
    %1596 = vmatpush1.msra.mxu0 0.0
    %1597 = vmatprep.subr.mxu0 0.0
    %1598 = vmatpush1.msra.mxu0 0.0
    %1599 = vmatprep.subr.mxu0 0.0
    %1600 = vmatpush1.msra.mxu0 0.0
    %1601 = vmatprep.subr.mxu0 0.0
    %1602 = vmatpush1.msra.mxu0 0.0
    %1603 = vmatprep.subr.mxu0 0.0
    %1604 = vmatpush1.msra.mxu0 0.0
    %1605 = vmatprep.subr.mxu0 0.0
    %1606 = vmatpush1.msra.mxu0 0.0
    %1607 = vmatprep.subr.mxu0 0.0
    %1608 = vmatpush1.msra.mxu0 0.0
    %1609 = vmatprep.mubr.f32.mxu0 0.0
    %1610 = vmatmul.mubr.f32.gmra.mrb[0].mxu0 %v1307
    %v1611 = vpop.f32.mrb[0].mxu0
    %v1612 = vadd.f32 0.0, %v1611
    %v1613 = vpop.f32.mrb[0].mxu0
    %1614 = vdwg.mxu0
    %v1615 = vadd.f32 %v1542, %v1612
    %v1616 = vtanh.pop %v1615
    %v1617 = vmul.f32 %v1616, 0.5
    %v1618 = vadd.f32 %v1617, 0.5
    %v1619 = vmul.f32 %v1618, %v1297
    %1621 = vrot.lane.b32.xlu0 %v1616, 64
    %v1622 = vpop.permute.xlu0 %1621
    %v1624 = vmul.f32 %v1618, %v1622
    %1626 = vrot.lane.b32.xlu0 %v1624, 32
    %v1627 = vpop.permute.xlu0 %1626
    %v1629 = vadd.f32 %v1619, %v1627
    %v1630 = vtanh.pop %v1629
    %1632 = vrot.lane.b32.xlu0 %v1630, 64
    %v1633 = vpop.permute.xlu0 %1632
    %v1635 = vmul.f32 %v1618, %v1633
    %1637 = vrot.lane.b32.xlu0 %v1635, 32
    %v1638 = vpop.permute.xlu0 %1637
    %v1639 = vsel %vm123, %v1638, 0
    %1641 = vmatprep.subr.mxu0 0.0
    %1642 = vmatpush1.msra.mxu0 %v93
    %1643 = vmatprep.subr.mxu0 0.0
    %1644 = vmatpush1.msra.mxu0 %v94
    %1645 = vmatprep.subr.mxu0 0.0
    %1646 = vmatpush1.msra.mxu0 %v95
    %1647 = vmatprep.subr.mxu0 0.0
    %1648 = vmatpush1.msra.mxu0 %v96
    %1649 = vmatprep.subr.mxu0 0.0
    %1650 = vmatpush1.msra.mxu0 0.0
    %1651 = vmatprep.subr.mxu0 0.0
    %1652 = vmatpush1.msra.mxu0 0.0
    %1653 = vmatprep.subr.mxu0 0.0
    %1654 = vmatpush1.msra.mxu0 0.0
    %1655 = vmatprep.subr.mxu0 0.0
    %1656 = vmatpush1.msra.mxu0 0.0
    %1657 = vmatprep.subr.mxu0 0.0
    %1658 = vmatpush1.msra.mxu0 0.0
    %1659 = vmatprep.subr.mxu0 0.0
    %1660 = vmatpush1.msra.mxu0 0.0
    %1661 = vmatprep.subr.mxu0 0.0
    %1662 = vmatpush1.msra.mxu0 0.0
    %1663 = vmatprep.subr.mxu0 0.0
    %1664 = vmatpush1.msra.mxu0 0.0
    %1665 = vmatprep.subr.mxu0 0.0
    %1666 = vmatpush1.msra.mxu0 0.0
    %1667 = vmatprep.subr.mxu0 0.0
    %1668 = vmatpush1.msra.mxu0 0.0
    %1669 = vmatprep.subr.mxu0 0.0
    %1670 = vmatpush1.msra.mxu0 0.0
    %1671 = vmatprep.subr.mxu0 0.0
    %1672 = vmatpush1.msra.mxu0 0.0
    %1673 = vmatprep.subr.mxu0 0.0
    %1674 = vmatpush1.msra.mxu0 0.0
    %1675 = vmatprep.subr.mxu0 0.0
    %1676 = vmatpush1.msra.mxu0 0.0
    %1677 = vmatprep.subr.mxu0 0.0
    %1678 = vmatpush1.msra.mxu0 0.0
    %1679 = vmatprep.subr.mxu0 0.0
    %1680 = vmatpush1.msra.mxu0 0.0
    %1681 = vmatprep.subr.mxu0 0.0
    %1682 = vmatpush1.msra.mxu0 0.0
    %1683 = vmatprep.subr.mxu0 0.0
    %1684 = vmatpush1.msra.mxu0 0.0
    %1685 = vmatprep.subr.mxu0 0.0
    %1686 = vmatpush1.msra.mxu0 0.0
    %1687 = vmatprep.subr.mxu0 0.0
    %1688 = vmatpush1.msra.mxu0 0.0
    %1689 = vmatprep.subr.mxu0 0.0
    %1690 = vmatpush1.msra.mxu0 0.0
    %1691 = vmatprep.subr.mxu0 0.0
    %1692 = vmatpush1.msra.mxu0 0.0
    %1693 = vmatprep.subr.mxu0 0.0
    %1694 = vmatpush1.msra.mxu0 0.0
    %1695 = vmatprep.subr.mxu0 0.0
    %1696 = vmatpush1.msra.mxu0 0.0
    %1697 = vmatprep.subr.mxu0 0.0
    %1698 = vmatpush1.msra.mxu0 0.0
    %1699 = vmatprep.subr.mxu0 0.0
    %1700 = vmatpush1.msra.mxu0 0.0
    %1701 = vmatprep.subr.mxu0 0.0
    %1702 = vmatpush1.msra.mxu0 0.0
    %1703 = vmatprep.subr.mxu0 0.0
    %1704 = vmatpush1.msra.mxu0 0.0
    %1705 = vmatprep.mubr.f32.mxu0 0.0
    %1706 = vmatmul.mubr.f32.gmra.mrb[0].mxu0 %v1639
    %v1707 = vpop.f32.mrb[0].mxu0
    %v1708 = vadd.f32 %v114, %v1707
    %v1709 = vpop.f32.mrb[0].mxu0
    %1710 = vdwg.mxu0
    %1711 = vmatprep.subr.mxu0 0.0
    %1712 = vmatpush1.msra.mxu0 %v97
    %1713 = vmatprep.subr.mxu0 0.0
    %1714 = vmatpush1.msra.mxu0 %v98
    %1715 = vmatprep.subr.mxu0 0.0
    %1716 = vmatpush1.msra.mxu0 %v99
    %1717 = vmatprep.subr.mxu0 0.0
    %1718 = vmatpush1.msra.mxu0 %v100
    %1719 = vmatprep.subr.mxu0 0.0
    %1720 = vmatpush1.msra.mxu0 0.0
    %1721 = vmatprep.subr.mxu0 0.0
    %1722 = vmatpush1.msra.mxu0 0.0
    %1723 = vmatprep.subr.mxu0 0.0
    %1724 = vmatpush1.msra.mxu0 0.0
    %1725 = vmatprep.subr.mxu0 0.0
    %1726 = vmatpush1.msra.mxu0 0.0
    %1727 = vmatprep.subr.mxu0 0.0
    %1728 = vmatpush1.msra.mxu0 0.0
    %1729 = vmatprep.subr.mxu0 0.0
    %1730 = vmatpush1.msra.mxu0 0.0
    %1731 = vmatprep.subr.mxu0 0.0
    %1732 = vmatpush1.msra.mxu0 0.0
    %1733 = vmatprep.subr.mxu0 0.0
    %1734 = vmatpush1.msra.mxu0 0.0
    %1735 = vmatprep.subr.mxu0 0.0
    %1736 = vmatpush1.msra.mxu0 0.0
    %1737 = vmatprep.subr.mxu0 0.0
    %1738 = vmatpush1.msra.mxu0 0.0
    %1739 = vmatprep.subr.mxu0 0.0
    %1740 = vmatpush1.msra.mxu0 0.0
    %1741 = vmatprep.subr.mxu0 0.0
    %1742 = vmatpush1.msra.mxu0 0.0
    %1743 = vmatprep.subr.mxu0 0.0
    %1744 = vmatpush1.msra.mxu0 0.0
    %1745 = vmatprep.subr.mxu0 0.0
    %1746 = vmatpush1.msra.mxu0 0.0
    %1747 = vmatprep.subr.mxu0 0.0
    %1748 = vmatpush1.msra.mxu0 0.0
    %1749 = vmatprep.subr.mxu0 0.0
    %1750 = vmatpush1.msra.mxu0 0.0
    %1751 = vmatprep.subr.mxu0 0.0
    %1752 = vmatpush1.msra.mxu0 0.0
    %1753 = vmatprep.subr.mxu0 0.0
    %1754 = vmatpush1.msra.mxu0 0.0
    %1755 = vmatprep.subr.mxu0 0.0
    %1756 = vmatpush1.msra.mxu0 0.0
    %1757 = vmatprep.subr.mxu0 0.0
    %1758 = vmatpush1.msra.mxu0 0.0
    %1759 = vmatprep.subr.mxu0 0.0
    %1760 = vmatpush1.msra.mxu0 0.0
    %1761 = vmatprep.subr.mxu0 0.0
    %1762 = vmatpush1.msra.mxu0 0.0
    %1763 = vmatprep.subr.mxu0 0.0
    %1764 = vmatpush1.msra.mxu0 0.0
    %1765 = vmatprep.subr.mxu0 0.0
    %1766 = vmatpush1.msra.mxu0 0.0
    %1767 = vmatprep.subr.mxu0 0.0
    %1768 = vmatpush1.msra.mxu0 0.0
    %1769 = vmatprep.subr.mxu0 0.0
    %1770 = vmatpush1.msra.mxu0 0.0
    %1771 = vmatprep.subr.mxu0 0.0
    %1772 = vmatpush1.msra.mxu0 0.0
    %1773 = vmatprep.subr.mxu0 0.0
    %1774 = vmatpush1.msra.mxu0 0.0
    %1775 = vmatprep.mubr.f32.mxu0 0.0
    %1776 = vmatmul.mubr.f32.gmra.mrb[0].mxu0 %v1473
    %v1777 = vpop.f32.mrb[0].mxu0
    %v1778 = vadd.f32 0.0, %v1777
    %v1779 = vpop.f32.mrb[0].mxu0
    %1780 = vdwg.mxu0
    %v1781 = vadd.f32 %v1708, %v1778
    %v1782 = vtanh.pop %v1781
    %v1783 = vmul.f32 %v1782, 0.5
    %v1784 = vadd.f32 %v1783, 0.5
    %v1785 = vmul.f32 %v1784, %v1463
    %1787 = vrot.lane.b32.xlu0 %v1782, 64
    %v1788 = vpop.permute.xlu0 %1787
    %v1790 = vmul.f32 %v1784, %v1788
    %1792 = vrot.lane.b32.xlu0 %v1790, 32
    %v1793 = vpop.permute.xlu0 %1792
    %v1795 = vadd.f32 %v1785, %v1793
    %v1796 = vtanh.pop %v1795
    %1798 = vrot.lane.b32.xlu0 %v1796, 64
    %v1799 = vpop.permute.xlu0 %1798
    %v1801 = vmul.f32 %v1784, %v1799
    %1803 = vrot.lane.b32.xlu0 %v1801, 32
    %v1804 = vpop.permute.xlu0 %1803
    %v1805 = vsel %vm123, %v1804, 0
    %1807 = vmatprep.subr.mxu0 0.0
    %1808 = vmatpush1.msra.mxu0 %v101
    %1809 = vmatprep.subr.mxu0 0.0
    %1810 = vmatpush1.msra.mxu0 %v102
    %1811 = vmatprep.subr.mxu0 0.0
    %1812 = vmatpush1.msra.mxu0 %v103
    %1813 = vmatprep.subr.mxu0 0.0
    %1814 = vmatpush1.msra.mxu0 %v104
    %1815 = vmatprep.subr.mxu0 0.0
    %1816 = vmatpush1.msra.mxu0 0.0
    %1817 = vmatprep.subr.mxu0 0.0
    %1818 = vmatpush1.msra.mxu0 0.0
    %1819 = vmatprep.subr.mxu0 0.0
    %1820 = vmatpush1.msra.mxu0 0.0
    %1821 = vmatprep.subr.mxu0 0.0
    %1822 = vmatpush1.msra.mxu0 0.0
    %1823 = vmatprep.subr.mxu0 0.0
    %1824 = vmatpush1.msra.mxu0 0.0
    %1825 = vmatprep.subr.mxu0 0.0
    %1826 = vmatpush1.msra.mxu0 0.0
    %1827 = vmatprep.subr.mxu0 0.0
    %1828 = vmatpush1.msra.mxu0 0.0
    %1829 = vmatprep.subr.mxu0 0.0
    %1830 = vmatpush1.msra.mxu0 0.0
    %1831 = vmatprep.subr.mxu0 0.0
    %1832 = vmatpush1.msra.mxu0 0.0
    %1833 = vmatprep.subr.mxu0 0.0
    %1834 = vmatpush1.msra.mxu0 0.0
    %1835 = vmatprep.subr.mxu0 0.0
    %1836 = vmatpush1.msra.mxu0 0.0
    %1837 = vmatprep.subr.mxu0 0.0
    %1838 = vmatpush1.msra.mxu0 0.0
    %1839 = vmatprep.subr.mxu0 0.0
    %1840 = vmatpush1.msra.mxu0 0.0
    %1841 = vmatprep.subr.mxu0 0.0
    %1842 = vmatpush1.msra.mxu0 0.0
    %1843 = vmatprep.subr.mxu0 0.0
    %1844 = vmatpush1.msra.mxu0 0.0
    %1845 = vmatprep.subr.mxu0 0.0
    %1846 = vmatpush1.msra.mxu0 0.0
    %1847 = vmatprep.subr.mxu0 0.0
    %1848 = vmatpush1.msra.mxu0 0.0
    %1849 = vmatprep.subr.mxu0 0.0
    %1850 = vmatpush1.msra.mxu0 0.0
    %1851 = vmatprep.subr.mxu0 0.0
    %1852 = vmatpush1.msra.mxu0 0.0
    %1853 = vmatprep.subr.mxu0 0.0
    %1854 = vmatpush1.msra.mxu0 0.0
    %1855 = vmatprep.subr.mxu0 0.0
    %1856 = vmatpush1.msra.mxu0 0.0
    %1857 = vmatprep.subr.mxu0 0.0
    %1858 = vmatpush1.msra.mxu0 0.0
    %1859 = vmatprep.subr.mxu0 0.0
    %1860 = vmatpush1.msra.mxu0 0.0
    %1861 = vmatprep.subr.mxu0 0.0
    %1862 = vmatpush1.msra.mxu0 0.0
    %1863 = vmatprep.subr.mxu0 0.0
    %1864 = vmatpush1.msra.mxu0 0.0
    %1865 = vmatprep.subr.mxu0 0.0
    %1866 = vmatpush1.msra.mxu0 0.0
    %1867 = vmatprep.subr.mxu0 0.0
    %1868 = vmatpush1.msra.mxu0 0.0
    %1869 = vmatprep.subr.mxu0 0.0
    %1870 = vmatpush1.msra.mxu0 0.0
    %1871 = vmatprep.mubr.f32.mxu0 0.0
    %1872 = vmatmul.mubr.f32.gmra.mrb[0].mxu0 %v1805
    %v1873 = vpop.f32.mrb[0].mxu0
    %v1874 = vadd.f32 %v121, %v1873
    %v1875 = vpop.f32.mrb[0].mxu0
    %1876 = vdwg.mxu0
    %1877 = vmatprep.subr.mxu0 0.0
    %1878 = vmatpush1.msra.mxu0 %v105
    %1879 = vmatprep.subr.mxu0 0.0
    %1880 = vmatpush1.msra.mxu0 %v106
    %1881 = vmatprep.subr.mxu0 0.0
    %1882 = vmatpush1.msra.mxu0 %v107
    %1883 = vmatprep.subr.mxu0 0.0
    %1884 = vmatpush1.msra.mxu0 %v108
    %1885 = vmatprep.subr.mxu0 0.0
    %1886 = vmatpush1.msra.mxu0 0.0
    %1887 = vmatprep.subr.mxu0 0.0
    %1888 = vmatpush1.msra.mxu0 0.0
    %1889 = vmatprep.subr.mxu0 0.0
    %1890 = vmatpush1.msra.mxu0 0.0
    %1891 = vmatprep.subr.mxu0 0.0
    %1892 = vmatpush1.msra.mxu0 0.0
    %1893 = vmatprep.subr.mxu0 0.0
    %1894 = vmatpush1.msra.mxu0 0.0
    %1895 = vmatprep.subr.mxu0 0.0
    %1896 = vmatpush1.msra.mxu0 0.0
    %1897 = vmatprep.subr.mxu0 0.0
    %1898 = vmatpush1.msra.mxu0 0.0
    %1899 = vmatprep.subr.mxu0 0.0
    %1900 = vmatpush1.msra.mxu0 0.0
    %1901 = vmatprep.subr.mxu0 0.0
    %1902 = vmatpush1.msra.mxu0 0.0
    %1903 = vmatprep.subr.mxu0 0.0
    %1904 = vmatpush1.msra.mxu0 0.0
    %1905 = vmatprep.subr.mxu0 0.0
    %1906 = vmatpush1.msra.mxu0 0.0
    %1907 = vmatprep.subr.mxu0 0.0
    %1908 = vmatpush1.msra.mxu0 0.0
    %1909 = vmatprep.subr.mxu0 0.0
    %1910 = vmatpush1.msra.mxu0 0.0
    %1911 = vmatprep.subr.mxu0 0.0
    %1912 = vmatpush1.msra.mxu0 0.0
    %1913 = vmatprep.subr.mxu0 0.0
    %1914 = vmatpush1.msra.mxu0 0.0
    %1915 = vmatprep.subr.mxu0 0.0
    %1916 = vmatpush1.msra.mxu0 0.0
    %1917 = vmatprep.subr.mxu0 0.0
    %1918 = vmatpush1.msra.mxu0 0.0
    %1919 = vmatprep.subr.mxu0 0.0
    %1920 = vmatpush1.msra.mxu0 0.0
    %1921 = vmatprep.subr.mxu0 0.0
    %1922 = vmatpush1.msra.mxu0 0.0
    %1923 = vmatprep.subr.mxu0 0.0
    %1924 = vmatpush1.msra.mxu0 0.0
    %1925 = vmatprep.subr.mxu0 0.0
    %1926 = vmatpush1.msra.mxu0 0.0
    %1927 = vmatprep.subr.mxu0 0.0
    %1928 = vmatpush1.msra.mxu0 0.0
    %1929 = vmatprep.subr.mxu0 0.0
    %1930 = vmatpush1.msra.mxu0 0.0
    %1931 = vmatprep.subr.mxu0 0.0
    %1932 = vmatpush1.msra.mxu0 0.0
    %1933 = vmatprep.subr.mxu0 0.0
    %1934 = vmatpush1.msra.mxu0 0.0
    %1935 = vmatprep.subr.mxu0 0.0
    %1936 = vmatpush1.msra.mxu0 0.0
    %1937 = vmatprep.subr.mxu0 0.0
    %1938 = vmatpush1.msra.mxu0 0.0
    %1939 = vmatprep.subr.mxu0 0.0
    %1940 = vmatpush1.msra.mxu0 0.0
    %1941 = vmatprep.mubr.f32.mxu0 0.0
    %1942 = vmatmul.mubr.f32.gmra.mrb[0].mxu0 %v1639
    %v1943 = vpop.f32.mrb[0].mxu0
    %v1944 = vadd.f32 0.0, %v1943
    %v1945 = vpop.f32.mrb[0].mxu0
    %1946 = vdwg.mxu0
    %v1947 = vadd.f32 %v1874, %v1944
    %v1948 = vtanh.pop %v1947
    %v1949 = vmul.f32 %v1948, 0.5
    %v1950 = vadd.f32 %v1949, 0.5
    %v1951 = vmul.f32 %v1950, %v1629
    %1953 = vrot.lane.b32.xlu0 %v1948, 64
    %v1954 = vpop.permute.xlu0 %1953
    %v1956 = vmul.f32 %v1950, %v1954
    %1958 = vrot.lane.b32.xlu0 %v1956, 32
    %v1959 = vpop.permute.xlu0 %1958
    %v1961 = vadd.f32 %v1951, %v1959
    %v1962 = vtanh.pop %v1961
    %1964 = vrot.lane.b32.xlu0 %v1962, 64
    %v1965 = vpop.permute.xlu0 %1964
    %v1967 = vmul.f32 %v1950, %v1965
    %1969 = vrot.lane.b32.xlu0 %v1967, 32
    %v1970 = vpop.permute.xlu0 %1969
    %v1971 = vsel %vm123, %v1970, 0
    %1973 = vmatprep.subr.mxu0 0.0
    %1974 = vmatpush1.msra.mxu0 %v93
    %1975 = vmatprep.subr.mxu0 0.0
    %1976 = vmatpush1.msra.mxu0 %v94
    %1977 = vmatprep.subr.mxu0 0.0
    %1978 = vmatpush1.msra.mxu0 %v95
    %1979 = vmatprep.subr.mxu0 0.0
    %1980 = vmatpush1.msra.mxu0 %v96
    %1981 = vmatprep.subr.mxu0 0.0
    %1982 = vmatpush1.msra.mxu0 0.0
    %1983 = vmatprep.subr.mxu0 0.0
    %1984 = vmatpush1.msra.mxu0 0.0
    %1985 = vmatprep.subr.mxu0 0.0
    %1986 = vmatpush1.msra.mxu0 0.0
    %1987 = vmatprep.subr.mxu0 0.0
    %1988 = vmatpush1.msra.mxu0 0.0
    %1989 = vmatprep.subr.mxu0 0.0
    %1990 = vmatpush1.msra.mxu0 0.0
    %1991 = vmatprep.subr.mxu0 0.0
    %1992 = vmatpush1.msra.mxu0 0.0
    %1993 = vmatprep.subr.mxu0 0.0
    %1994 = vmatpush1.msra.mxu0 0.0
    %1995 = vmatprep.subr.mxu0 0.0
    %1996 = vmatpush1.msra.mxu0 0.0
    %1997 = vmatprep.subr.mxu0 0.0
    %1998 = vmatpush1.msra.mxu0 0.0
    %1999 = vmatprep.subr.mxu0 0.0
    %2000 = vmatpush1.msra.mxu0 0.0
    %2001 = vmatprep.subr.mxu0 0.0
    %2002 = vmatpush1.msra.mxu0 0.0
    %2003 = vmatprep.subr.mxu0 0.0
    %2004 = vmatpush1.msra.mxu0 0.0
    %2005 = vmatprep.subr.mxu0 0.0
    %2006 = vmatpush1.msra.mxu0 0.0
    %2007 = vmatprep.subr.mxu0 0.0
    %2008 = vmatpush1.msra.mxu0 0.0
    %2009 = vmatprep.subr.mxu0 0.0
    %2010 = vmatpush1.msra.mxu0 0.0
    %2011 = vmatprep.subr.mxu0 0.0
    %2012 = vmatpush1.msra.mxu0 0.0
    %2013 = vmatprep.subr.mxu0 0.0
    %2014 = vmatpush1.msra.mxu0 0.0
    %2015 = vmatprep.subr.mxu0 0.0
    %2016 = vmatpush1.msra.mxu0 0.0
    %2017 = vmatprep.subr.mxu0 0.0
    %2018 = vmatpush1.msra.mxu0 0.0
    %2019 = vmatprep.subr.mxu0 0.0
    %2020 = vmatpush1.msra.mxu0 0.0
    %2021 = vmatprep.subr.mxu0 0.0
    %2022 = vmatpush1.msra.mxu0 0.0
    %2023 = vmatprep.subr.mxu0 0.0
    %2024 = vmatpush1.msra.mxu0 0.0
    %2025 = vmatprep.subr.mxu0 0.0
    %2026 = vmatpush1.msra.mxu0 0.0
    %2027 = vmatprep.subr.mxu0 0.0
    %2028 = vmatpush1.msra.mxu0 0.0
    %2029 = vmatprep.subr.mxu0 0.0
    %2030 = vmatpush1.msra.mxu0 0.0
    %2031 = vmatprep.subr.mxu0 0.0
    %2032 = vmatpush1.msra.mxu0 0.0
    %2033 = vmatprep.subr.mxu0 0.0
    %2034 = vmatpush1.msra.mxu0 0.0
    %2035 = vmatprep.subr.mxu0 0.0
    %2036 = vmatpush1.msra.mxu0 0.0
    %2037 = vmatprep.mubr.f32.mxu0 0.0
    %2038 = vmatmul.mubr.f32.gmra.mrb[0].mxu0 %v1971
    %v2039 = vpop.f32.mrb[0].mxu0
    %v2040 = vadd.f32 %v114, %v2039
    %v2041 = vpop.f32.mrb[0].mxu0
    %2042 = vdwg.mxu0
    %2043 = vmatprep.subr.mxu0 0.0
    %2044 = vmatpush1.msra.mxu0 %v97
    %2045 = vmatprep.subr.mxu0 0.0
    %2046 = vmatpush1.msra.mxu0 %v98
    %2047 = vmatprep.subr.mxu0 0.0
    %2048 = vmatpush1.msra.mxu0 %v99
    %2049 = vmatprep.subr.mxu0 0.0
    %2050 = vmatpush1.msra.mxu0 %v100
    %2051 = vmatprep.subr.mxu0 0.0
    %2052 = vmatpush1.msra.mxu0 0.0
    %2053 = vmatprep.subr.mxu0 0.0
    %2054 = vmatpush1.msra.mxu0 0.0
    %2055 = vmatprep.subr.mxu0 0.0
    %2056 = vmatpush1.msra.mxu0 0.0
    %2057 = vmatprep.subr.mxu0 0.0
    %2058 = vmatpush1.msra.mxu0 0.0
    %2059 = vmatprep.subr.mxu0 0.0
    %2060 = vmatpush1.msra.mxu0 0.0
    %2061 = vmatprep.subr.mxu0 0.0
    %2062 = vmatpush1.msra.mxu0 0.0
    %2063 = vmatprep.subr.mxu0 0.0
    %2064 = vmatpush1.msra.mxu0 0.0
    %2065 = vmatprep.subr.mxu0 0.0
    %2066 = vmatpush1.msra.mxu0 0.0
    %2067 = vmatprep.subr.mxu0 0.0
    %2068 = vmatpush1.msra.mxu0 0.0
    %2069 = vmatprep.subr.mxu0 0.0
    %2070 = vmatpush1.msra.mxu0 0.0
    %2071 = vmatprep.subr.mxu0 0.0
    %2072 = vmatpush1.msra.mxu0 0.0
    %2073 = vmatprep.subr.mxu0 0.0
    %2074 = vmatpush1.msra.mxu0 0.0
    %2075 = vmatprep.subr.mxu0 0.0
    %2076 = vmatpush1.msra.mxu0 0.0
    %2077 = vmatprep.subr.mxu0 0.0
    %2078 = vmatpush1.msra.mxu0 0.0
    %2079 = vmatprep.subr.mxu0 0.0
    %2080 = vmatpush1.msra.mxu0 0.0
    %2081 = vmatprep.subr.mxu0 0.0
    %2082 = vmatpush1.msra.mxu0 0.0
    %2083 = vmatprep.subr.mxu0 0.0
    %2084 = vmatpush1.msra.mxu0 0.0
    %2085 = vmatprep.subr.mxu0 0.0
    %2086 = vmatpush1.msra.mxu0 0.0
    %2087 = vmatprep.subr.mxu0 0.0
    %2088 = vmatpush1.msra.mxu0 0.0
    %2089 = vmatprep.subr.mxu0 0.0
    %2090 = vmatpush1.msra.mxu0 0.0
    %2091 = vmatprep.subr.mxu0 0.0
    %2092 = vmatpush1.msra.mxu0 0.0
    %2093 = vmatprep.subr.mxu0 0.0
    %2094 = vmatpush1.msra.mxu0 0.0
    %2095 = vmatprep.subr.mxu0 0.0
    %2096 = vmatpush1.msra.mxu0 0.0
    %2097 = vmatprep.subr.mxu0 0.0
    %2098 = vmatpush1.msra.mxu0 0.0
    %2099 = vmatprep.subr.mxu0 0.0
    %2100 = vmatpush1.msra.mxu0 0.0
    %2101 = vmatprep.subr.mxu0 0.0
    %2102 = vmatpush1.msra.mxu0 0.0
    %2103 = vmatprep.subr.mxu0 0.0
    %2104 = vmatpush1.msra.mxu0 0.0
    %2105 = vmatprep.subr.mxu0 0.0
    %2106 = vmatpush1.msra.mxu0 0.0
    %2107 = vmatprep.mubr.f32.mxu0 0.0
    %2108 = vmatmul.mubr.f32.gmra.mrb[0].mxu0 %v1805
    %v2109 = vpop.f32.mrb[0].mxu0
    %v2110 = vadd.f32 0.0, %v2109
    %v2111 = vpop.f32.mrb[0].mxu0
    %2112 = vdwg.mxu0
    %v2113 = vadd.f32 %v2040, %v2110
    %v2114 = vtanh.pop %v2113
    %v2115 = vmul.f32 %v2114, 0.5
    %v2116 = vadd.f32 %v2115, 0.5
    %v2117 = vmul.f32 %v2116, %v1795
    %2119 = vrot.lane.b32.xlu0 %v2114, 64
    %v2120 = vpop.permute.xlu0 %2119
    %v2122 = vmul.f32 %v2116, %v2120
    %2124 = vrot.lane.b32.xlu0 %v2122, 32
    %v2125 = vpop.permute.xlu0 %2124
    %v2127 = vadd.f32 %v2117, %v2125
    %v2128 = vtanh.pop %v2127
    %2130 = vrot.lane.b32.xlu0 %v2128, 64
    %v2131 = vpop.permute.xlu0 %2130
    %v2133 = vmul.f32 %v2116, %v2131
    %2135 = vrot.lane.b32.xlu0 %v2133, 32
    %v2136 = vpop.permute.xlu0 %2135
    %v2137 = vsel %vm123, %v2136, 0
    %2139 = vmatprep.subr.mxu0 0.0
    %2140 = vmatpush1.msra.mxu0 %v101
    %2141 = vmatprep.subr.mxu0 0.0
    %2142 = vmatpush1.msra.mxu0 %v102
    %2143 = vmatprep.subr.mxu0 0.0
    %2144 = vmatpush1.msra.mxu0 %v103
    %2145 = vmatprep.subr.mxu0 0.0
    %2146 = vmatpush1.msra.mxu0 %v104
    %2147 = vmatprep.subr.mxu0 0.0
    %2148 = vmatpush1.msra.mxu0 0.0
    %2149 = vmatprep.subr.mxu0 0.0
    %2150 = vmatpush1.msra.mxu0 0.0
    %2151 = vmatprep.subr.mxu0 0.0
    %2152 = vmatpush1.msra.mxu0 0.0
    %2153 = vmatprep.subr.mxu0 0.0
    %2154 = vmatpush1.msra.mxu0 0.0
    %2155 = vmatprep.subr.mxu0 0.0
    %2156 = vmatpush1.msra.mxu0 0.0
    %2157 = vmatprep.subr.mxu0 0.0
    %2158 = vmatpush1.msra.mxu0 0.0
    %2159 = vmatprep.subr.mxu0 0.0
    %2160 = vmatpush1.msra.mxu0 0.0
    %2161 = vmatprep.subr.mxu0 0.0
    %2162 = vmatpush1.msra.mxu0 0.0
    %2163 = vmatprep.subr.mxu0 0.0
    %2164 = vmatpush1.msra.mxu0 0.0
    %2165 = vmatprep.subr.mxu0 0.0
    %2166 = vmatpush1.msra.mxu0 0.0
    %2167 = vmatprep.subr.mxu0 0.0
    %2168 = vmatpush1.msra.mxu0 0.0
    %2169 = vmatprep.subr.mxu0 0.0
    %2170 = vmatpush1.msra.mxu0 0.0
    %2171 = vmatprep.subr.mxu0 0.0
    %2172 = vmatpush1.msra.mxu0 0.0
    %2173 = vmatprep.subr.mxu0 0.0
    %2174 = vmatpush1.msra.mxu0 0.0
    %2175 = vmatprep.subr.mxu0 0.0
    %2176 = vmatpush1.msra.mxu0 0.0
    %2177 = vmatprep.subr.mxu0 0.0
    %2178 = vmatpush1.msra.mxu0 0.0
    %2179 = vmatprep.subr.mxu0 0.0
    %2180 = vmatpush1.msra.mxu0 0.0
    %2181 = vmatprep.subr.mxu0 0.0
    %2182 = vmatpush1.msra.mxu0 0.0
    %2183 = vmatprep.subr.mxu0 0.0
    %2184 = vmatpush1.msra.mxu0 0.0
    %2185 = vmatprep.subr.mxu0 0.0
    %2186 = vmatpush1.msra.mxu0 0.0
    %2187 = vmatprep.subr.mxu0 0.0
    %2188 = vmatpush1.msra.mxu0 0.0
    %2189 = vmatprep.subr.mxu0 0.0
    %2190 = vmatpush1.msra.mxu0 0.0
    %2191 = vmatprep.subr.mxu0 0.0
    %2192 = vmatpush1.msra.mxu0 0.0
    %2193 = vmatprep.subr.mxu0 0.0
    %2194 = vmatpush1.msra.mxu0 0.0
    %2195 = vmatprep.subr.mxu0 0.0
    %2196 = vmatpush1.msra.mxu0 0.0
    %2197 = vmatprep.subr.mxu0 0.0
    %2198 = vmatpush1.msra.mxu0 0.0
    %2199 = vmatprep.subr.mxu0 0.0
    %2200 = vmatpush1.msra.mxu0 0.0
    %2201 = vmatprep.subr.mxu0 0.0
    %2202 = vmatpush1.msra.mxu0 0.0
    %2203 = vmatprep.mubr.f32.mxu0 0.0
    %2204 = vmatmul.mubr.f32.gmra.mrb[0].mxu0 %v2137
    %v2205 = vpop.f32.mrb[0].mxu0
    %v2206 = vadd.f32 %v121, %v2205
    %v2207 = vpop.f32.mrb[0].mxu0
    %2208 = vdwg.mxu0
    %2209 = vmatprep.subr.mxu0 0.0
    %2210 = vmatpush1.msra.mxu0 %v105
    %2211 = vmatprep.subr.mxu0 0.0
    %2212 = vmatpush1.msra.mxu0 %v106
    %2213 = vmatprep.subr.mxu0 0.0
    %2214 = vmatpush1.msra.mxu0 %v107
    %2215 = vmatprep.subr.mxu0 0.0
    %2216 = vmatpush1.msra.mxu0 %v108
    %2217 = vmatprep.subr.mxu0 0.0
    %2218 = vmatpush1.msra.mxu0 0.0
    %2219 = vmatprep.subr.mxu0 0.0
    %2220 = vmatpush1.msra.mxu0 0.0
    %2221 = vmatprep.subr.mxu0 0.0
    %2222 = vmatpush1.msra.mxu0 0.0
    %2223 = vmatprep.subr.mxu0 0.0
    %2224 = vmatpush1.msra.mxu0 0.0
    %2225 = vmatprep.subr.mxu0 0.0
    %2226 = vmatpush1.msra.mxu0 0.0
    %2227 = vmatprep.subr.mxu0 0.0
    %2228 = vmatpush1.msra.mxu0 0.0
    %2229 = vmatprep.subr.mxu0 0.0
    %2230 = vmatpush1.msra.mxu0 0.0
    %2231 = vmatprep.subr.mxu0 0.0
    %2232 = vmatpush1.msra.mxu0 0.0
    %2233 = vmatprep.subr.mxu0 0.0
    %2234 = vmatpush1.msra.mxu0 0.0
    %2235 = vmatprep.subr.mxu0 0.0
    %2236 = vmatpush1.msra.mxu0 0.0
    %2237 = vmatprep.subr.mxu0 0.0
    %2238 = vmatpush1.msra.mxu0 0.0
    %2239 = vmatprep.subr.mxu0 0.0
    %2240 = vmatpush1.msra.mxu0 0.0
    %2241 = vmatprep.subr.mxu0 0.0
    %2242 = vmatpush1.msra.mxu0 0.0
    %2243 = vmatprep.subr.mxu0 0.0
    %2244 = vmatpush1.msra.mxu0 0.0
    %2245 = vmatprep.subr.mxu0 0.0
    %2246 = vmatpush1.msra.mxu0 0.0
    %2247 = vmatprep.subr.mxu0 0.0
    %2248 = vmatpush1.msra.mxu0 0.0
    %2249 = vmatprep.subr.mxu0 0.0
    %2250 = vmatpush1.msra.mxu0 0.0
    %2251 = vmatprep.subr.mxu0 0.0
    %2252 = vmatpush1.msra.mxu0 0.0
    %2253 = vmatprep.subr.mxu0 0.0
    %2254 = vmatpush1.msra.mxu0 0.0
    %2255 = vmatprep.subr.mxu0 0.0
    %2256 = vmatpush1.msra.mxu0 0.0
    %2257 = vmatprep.subr.mxu0 0.0
    %2258 = vmatpush1.msra.mxu0 0.0
    %2259 = vmatprep.subr.mxu0 0.0
    %2260 = vmatpush1.msra.mxu0 0.0
    %2261 = vmatprep.subr.mxu0 0.0
    %2262 = vmatpush1.msra.mxu0 0.0
    %2263 = vmatprep.subr.mxu0 0.0
    %2264 = vmatpush1.msra.mxu0 0.0
    %2265 = vmatprep.subr.mxu0 0.0
    %2266 = vmatpush1.msra.mxu0 0.0
    %2267 = vmatprep.subr.mxu0 0.0
    %2268 = vmatpush1.msra.mxu0 0.0
    %2269 = vmatprep.subr.mxu0 0.0
    %2270 = vmatpush1.msra.mxu0 0.0
    %2271 = vmatprep.subr.mxu0 0.0
    %2272 = vmatpush1.msra.mxu0 0.0
    %2273 = vmatprep.mubr.f32.mxu0 0.0
    %2274 = vmatmul.mubr.f32.gmra.mrb[0].mxu0 %v1971
    %v2275 = vpop.f32.mrb[0].mxu0
    %v2276 = vadd.f32 0.0, %v2275
    %v2277 = vpop.f32.mrb[0].mxu0
    %2278 = vdwg.mxu0
    %v2279 = vadd.f32 %v2206, %v2276
    %v2280 = vtanh.pop %v2279
    %v2281 = vmul.f32 %v2280, 0.5
    %v2282 = vadd.f32 %v2281, 0.5
    %v2283 = vmul.f32 %v2282, %v1961
    %2285 = vrot.lane.b32.xlu0 %v2280, 64
    %v2286 = vpop.permute.xlu0 %2285
    %v2288 = vmul.f32 %v2282, %v2286
    %2290 = vrot.lane.b32.xlu0 %v2288, 32
    %v2291 = vpop.permute.xlu0 %2290
    %v2293 = vadd.f32 %v2283, %v2291
    %v2294 = vtanh.pop %v2293
    %2296 = vrot.lane.b32.xlu0 %v2294, 64
    %v2297 = vpop.permute.xlu0 %2296
    %v2299 = vmul.f32 %v2282, %v2297
    %2301 = vrot.lane.b32.xlu0 %v2299, 32
    %v2302 = vpop.permute.xlu0 %2301
    %v2303 = vsel %vm123, %v2302, 0
    %2305 = vmatprep.subr.mxu0 0.0
    %2306 = vmatpush1.msra.mxu0 %v93
    %2307 = vmatprep.subr.mxu0 0.0
    %2308 = vmatpush1.msra.mxu0 %v94
    %2309 = vmatprep.subr.mxu0 0.0
    %2310 = vmatpush1.msra.mxu0 %v95
    %2311 = vmatprep.subr.mxu0 0.0
    %2312 = vmatpush1.msra.mxu0 %v96
    %2313 = vmatprep.subr.mxu0 0.0
    %2314 = vmatpush1.msra.mxu0 0.0
    %2315 = vmatprep.subr.mxu0 0.0
    %2316 = vmatpush1.msra.mxu0 0.0
    %2317 = vmatprep.subr.mxu0 0.0
    %2318 = vmatpush1.msra.mxu0 0.0
    %2319 = vmatprep.subr.mxu0 0.0
    %2320 = vmatpush1.msra.mxu0 0.0
    %2321 = vmatprep.subr.mxu0 0.0
    %2322 = vmatpush1.msra.mxu0 0.0
    %2323 = vmatprep.subr.mxu0 0.0
    %2324 = vmatpush1.msra.mxu0 0.0
    %2325 = vmatprep.subr.mxu0 0.0
    %2326 = vmatpush1.msra.mxu0 0.0
    %2327 = vmatprep.subr.mxu0 0.0
    %2328 = vmatpush1.msra.mxu0 0.0
    %2329 = vmatprep.subr.mxu0 0.0
    %2330 = vmatpush1.msra.mxu0 0.0
    %2331 = vmatprep.subr.mxu0 0.0
    %2332 = vmatpush1.msra.mxu0 0.0
    %2333 = vmatprep.subr.mxu0 0.0
    %2334 = vmatpush1.msra.mxu0 0.0
    %2335 = vmatprep.subr.mxu0 0.0
    %2336 = vmatpush1.msra.mxu0 0.0
    %2337 = vmatprep.subr.mxu0 0.0
    %2338 = vmatpush1.msra.mxu0 0.0
    %2339 = vmatprep.subr.mxu0 0.0
    %2340 = vmatpush1.msra.mxu0 0.0
    %2341 = vmatprep.subr.mxu0 0.0
    %2342 = vmatpush1.msra.mxu0 0.0
    %2343 = vmatprep.subr.mxu0 0.0
    %2344 = vmatpush1.msra.mxu0 0.0
    %2345 = vmatprep.subr.mxu0 0.0
    %2346 = vmatpush1.msra.mxu0 0.0
    %2347 = vmatprep.subr.mxu0 0.0
    %2348 = vmatpush1.msra.mxu0 0.0
    %2349 = vmatprep.subr.mxu0 0.0
    %2350 = vmatpush1.msra.mxu0 0.0
    %2351 = vmatprep.subr.mxu0 0.0
    %2352 = vmatpush1.msra.mxu0 0.0
    %2353 = vmatprep.subr.mxu0 0.0
    %2354 = vmatpush1.msra.mxu0 0.0
    %2355 = vmatprep.subr.mxu0 0.0
    %2356 = vmatpush1.msra.mxu0 0.0
    %2357 = vmatprep.subr.mxu0 0.0
    %2358 = vmatpush1.msra.mxu0 0.0
    %2359 = vmatprep.subr.mxu0 0.0
    %2360 = vmatpush1.msra.mxu0 0.0
    %2361 = vmatprep.subr.mxu0 0.0
    %2362 = vmatpush1.msra.mxu0 0.0
    %2363 = vmatprep.subr.mxu0 0.0
    %2364 = vmatpush1.msra.mxu0 0.0
    %2365 = vmatprep.subr.mxu0 0.0
    %2366 = vmatpush1.msra.mxu0 0.0
    %2367 = vmatprep.subr.mxu0 0.0
    %2368 = vmatpush1.msra.mxu0 0.0
    %2369 = vmatprep.mubr.f32.mxu0 0.0
    %2370 = vmatmul.mubr.f32.gmra.mrb[0].mxu0 %v2303
    %v2371 = vpop.f32.mrb[0].mxu0
    %v2372 = vadd.f32 %v114, %v2371
    %v2373 = vpop.f32.mrb[0].mxu0
    %2374 = vdwg.mxu0
    %2375 = vmatprep.subr.mxu0 0.0
    %2376 = vmatpush1.msra.mxu0 %v97
    %2377 = vmatprep.subr.mxu0 0.0
    %2378 = vmatpush1.msra.mxu0 %v98
    %2379 = vmatprep.subr.mxu0 0.0
    %2380 = vmatpush1.msra.mxu0 %v99
    %2381 = vmatprep.subr.mxu0 0.0
    %2382 = vmatpush1.msra.mxu0 %v100
    %2383 = vmatprep.subr.mxu0 0.0
    %2384 = vmatpush1.msra.mxu0 0.0
    %2385 = vmatprep.subr.mxu0 0.0
    %2386 = vmatpush1.msra.mxu0 0.0
    %2387 = vmatprep.subr.mxu0 0.0
    %2388 = vmatpush1.msra.mxu0 0.0
    %2389 = vmatprep.subr.mxu0 0.0
    %2390 = vmatpush1.msra.mxu0 0.0
    %2391 = vmatprep.subr.mxu0 0.0
    %2392 = vmatpush1.msra.mxu0 0.0
    %2393 = vmatprep.subr.mxu0 0.0
    %2394 = vmatpush1.msra.mxu0 0.0
    %2395 = vmatprep.subr.mxu0 0.0
    %2396 = vmatpush1.msra.mxu0 0.0
    %2397 = vmatprep.subr.mxu0 0.0
    %2398 = vmatpush1.msra.mxu0 0.0
    %2399 = vmatprep.subr.mxu0 0.0
    %2400 = vmatpush1.msra.mxu0 0.0
    %2401 = vmatprep.subr.mxu0 0.0
    %2402 = vmatpush1.msra.mxu0 0.0
    %2403 = vmatprep.subr.mxu0 0.0
    %2404 = vmatpush1.msra.mxu0 0.0
    %2405 = vmatprep.subr.mxu0 0.0
    %2406 = vmatpush1.msra.mxu0 0.0
    %2407 = vmatprep.subr.mxu0 0.0
    %2408 = vmatpush1.msra.mxu0 0.0
    %2409 = vmatprep.subr.mxu0 0.0
    %2410 = vmatpush1.msra.mxu0 0.0
    %2411 = vmatprep.subr.mxu0 0.0
    %2412 = vmatpush1.msra.mxu0 0.0
    %2413 = vmatprep.subr.mxu0 0.0
    %2414 = vmatpush1.msra.mxu0 0.0
    %2415 = vmatprep.subr.mxu0 0.0
    %2416 = vmatpush1.msra.mxu0 0.0
    %2417 = vmatprep.subr.mxu0 0.0
    %2418 = vmatpush1.msra.mxu0 0.0
    %2419 = vmatprep.subr.mxu0 0.0
    %2420 = vmatpush1.msra.mxu0 0.0
    %2421 = vmatprep.subr.mxu0 0.0
    %2422 = vmatpush1.msra.mxu0 0.0
    %2423 = vmatprep.subr.mxu0 0.0
    %2424 = vmatpush1.msra.mxu0 0.0
    %2425 = vmatprep.subr.mxu0 0.0
    %2426 = vmatpush1.msra.mxu0 0.0
    %2427 = vmatprep.subr.mxu0 0.0
    %2428 = vmatpush1.msra.mxu0 0.0
    %2429 = vmatprep.subr.mxu0 0.0
    %2430 = vmatpush1.msra.mxu0 0.0
    %2431 = vmatprep.subr.mxu0 0.0
    %2432 = vmatpush1.msra.mxu0 0.0
    %2433 = vmatprep.subr.mxu0 0.0
    %2434 = vmatpush1.msra.mxu0 0.0
    %2435 = vmatprep.subr.mxu0 0.0
    %2436 = vmatpush1.msra.mxu0 0.0
    %2437 = vmatprep.subr.mxu0 0.0
    %2438 = vmatpush1.msra.mxu0 0.0
    %2439 = vmatprep.mubr.f32.mxu0 0.0
    %2440 = vmatmul.mubr.f32.gmra.mrb[0].mxu0 %v2137
    %v2441 = vpop.f32.mrb[0].mxu0
    %v2442 = vadd.f32 0.0, %v2441
    %v2443 = vpop.f32.mrb[0].mxu0
    %2444 = vdwg.mxu0
    %v2445 = vadd.f32 %v2372, %v2442
    %v2446 = vtanh.pop %v2445
    %v2447 = vmul.f32 %v2446, 0.5
    %v2448 = vadd.f32 %v2447, 0.5
    %v2449 = vmul.f32 %v2448, %v2127
    %2451 = vrot.lane.b32.xlu0 %v2446, 64
    %v2452 = vpop.permute.xlu0 %2451
    %v2454 = vmul.f32 %v2448, %v2452
    %2456 = vrot.lane.b32.xlu0 %v2454, 32
    %v2457 = vpop.permute.xlu0 %2456
    %v2459 = vadd.f32 %v2449, %v2457
    %v2460 = vtanh.pop %v2459
    %2462 = vrot.lane.b32.xlu0 %v2460, 64
    %v2463 = vpop.permute.xlu0 %2462
    %v2465 = vmul.f32 %v2448, %v2463
    %2467 = vrot.lane.b32.xlu0 %v2465, 32
    %v2468 = vpop.permute.xlu0 %2467
    %v2469 = vsel %vm123, %v2468, 0
    %2471 = vmatprep.subr.mxu0 0.0
    %2472 = vmatpush1.msra.mxu0 %v101
    %2473 = vmatprep.subr.mxu0 0.0
    %2474 = vmatpush1.msra.mxu0 %v102
    %2475 = vmatprep.subr.mxu0 0.0
    %2476 = vmatpush1.msra.mxu0 %v103
    %2477 = vmatprep.subr.mxu0 0.0
    %2478 = vmatpush1.msra.mxu0 %v104
    %2479 = vmatprep.subr.mxu0 0.0
    %2480 = vmatpush1.msra.mxu0 0.0
    %2481 = vmatprep.subr.mxu0 0.0
    %2482 = vmatpush1.msra.mxu0 0.0
    %2483 = vmatprep.subr.mxu0 0.0
    %2484 = vmatpush1.msra.mxu0 0.0
    %2485 = vmatprep.subr.mxu0 0.0
    %2486 = vmatpush1.msra.mxu0 0.0
    %2487 = vmatprep.subr.mxu0 0.0
    %2488 = vmatpush1.msra.mxu0 0.0
    %2489 = vmatprep.subr.mxu0 0.0
    %2490 = vmatpush1.msra.mxu0 0.0
    %2491 = vmatprep.subr.mxu0 0.0
    %2492 = vmatpush1.msra.mxu0 0.0
    %2493 = vmatprep.subr.mxu0 0.0
    %2494 = vmatpush1.msra.mxu0 0.0
    %2495 = vmatprep.subr.mxu0 0.0
    %2496 = vmatpush1.msra.mxu0 0.0
    %2497 = vmatprep.subr.mxu0 0.0
    %2498 = vmatpush1.msra.mxu0 0.0
    %2499 = vmatprep.subr.mxu0 0.0
    %2500 = vmatpush1.msra.mxu0 0.0
    %2501 = vmatprep.subr.mxu0 0.0
    %2502 = vmatpush1.msra.mxu0 0.0
    %2503 = vmatprep.subr.mxu0 0.0
    %2504 = vmatpush1.msra.mxu0 0.0
    %2505 = vmatprep.subr.mxu0 0.0
    %2506 = vmatpush1.msra.mxu0 0.0
    %2507 = vmatprep.subr.mxu0 0.0
    %2508 = vmatpush1.msra.mxu0 0.0
    %2509 = vmatprep.subr.mxu0 0.0
    %2510 = vmatpush1.msra.mxu0 0.0
    %2511 = vmatprep.subr.mxu0 0.0
    %2512 = vmatpush1.msra.mxu0 0.0
    %2513 = vmatprep.subr.mxu0 0.0
    %2514 = vmatpush1.msra.mxu0 0.0
    %2515 = vmatprep.subr.mxu0 0.0
    %2516 = vmatpush1.msra.mxu0 0.0
    %2517 = vmatprep.subr.mxu0 0.0
    %2518 = vmatpush1.msra.mxu0 0.0
    %2519 = vmatprep.subr.mxu0 0.0
    %2520 = vmatpush1.msra.mxu0 0.0
    %2521 = vmatprep.subr.mxu0 0.0
    %2522 = vmatpush1.msra.mxu0 0.0
    %2523 = vmatprep.subr.mxu0 0.0
    %2524 = vmatpush1.msra.mxu0 0.0
    %2525 = vmatprep.subr.mxu0 0.0
    %2526 = vmatpush1.msra.mxu0 0.0
    %2527 = vmatprep.subr.mxu0 0.0
    %2528 = vmatpush1.msra.mxu0 0.0
    %2529 = vmatprep.subr.mxu0 0.0
    %2530 = vmatpush1.msra.mxu0 0.0
    %2531 = vmatprep.subr.mxu0 0.0
    %2532 = vmatpush1.msra.mxu0 0.0
    %2533 = vmatprep.subr.mxu0 0.0
    %2534 = vmatpush1.msra.mxu0 0.0
    %2535 = vmatprep.mubr.f32.mxu0 0.0
    %2536 = vmatmul.mubr.f32.gmra.mrb[0].mxu0 %v2469
    %v2537 = vpop.f32.mrb[0].mxu0
    %v2538 = vadd.f32 %v121, %v2537
    %v2539 = vpop.f32.mrb[0].mxu0
    %2540 = vdwg.mxu0
    %2541 = vmatprep.subr.mxu0 0.0
    %2542 = vmatpush1.msra.mxu0 %v105
    %2543 = vmatprep.subr.mxu0 0.0
    %2544 = vmatpush1.msra.mxu0 %v106
    %2545 = vmatprep.subr.mxu0 0.0
    %2546 = vmatpush1.msra.mxu0 %v107
    %2547 = vmatprep.subr.mxu0 0.0
    %2548 = vmatpush1.msra.mxu0 %v108
    %2549 = vmatprep.subr.mxu0 0.0
    %2550 = vmatpush1.msra.mxu0 0.0
    %2551 = vmatprep.subr.mxu0 0.0
    %2552 = vmatpush1.msra.mxu0 0.0
    %2553 = vmatprep.subr.mxu0 0.0
    %2554 = vmatpush1.msra.mxu0 0.0
    %2555 = vmatprep.subr.mxu0 0.0
    %2556 = vmatpush1.msra.mxu0 0.0
    %2557 = vmatprep.subr.mxu0 0.0
    %2558 = vmatpush1.msra.mxu0 0.0
    %2559 = vmatprep.subr.mxu0 0.0
    %2560 = vmatpush1.msra.mxu0 0.0
    %2561 = vmatprep.subr.mxu0 0.0
    %2562 = vmatpush1.msra.mxu0 0.0
    %2563 = vmatprep.subr.mxu0 0.0
    %2564 = vmatpush1.msra.mxu0 0.0
    %2565 = vmatprep.subr.mxu0 0.0
    %2566 = vmatpush1.msra.mxu0 0.0
    %2567 = vmatprep.subr.mxu0 0.0
    %2568 = vmatpush1.msra.mxu0 0.0
    %2569 = vmatprep.subr.mxu0 0.0
    %2570 = vmatpush1.msra.mxu0 0.0
    %2571 = vmatprep.subr.mxu0 0.0
    %2572 = vmatpush1.msra.mxu0 0.0
    %2573 = vmatprep.subr.mxu0 0.0
    %2574 = vmatpush1.msra.mxu0 0.0
    %2575 = vmatprep.subr.mxu0 0.0
    %2576 = vmatpush1.msra.mxu0 0.0
    %2577 = vmatprep.subr.mxu0 0.0
    %2578 = vmatpush1.msra.mxu0 0.0
    %2579 = vmatprep.subr.mxu0 0.0
    %2580 = vmatpush1.msra.mxu0 0.0
    %2581 = vmatprep.subr.mxu0 0.0
    %2582 = vmatpush1.msra.mxu0 0.0
    %2583 = vmatprep.subr.mxu0 0.0
    %2584 = vmatpush1.msra.mxu0 0.0
    %2585 = vmatprep.subr.mxu0 0.0
    %2586 = vmatpush1.msra.mxu0 0.0
    %2587 = vmatprep.subr.mxu0 0.0
    %2588 = vmatpush1.msra.mxu0 0.0
    %2589 = vmatprep.subr.mxu0 0.0
    %2590 = vmatpush1.msra.mxu0 0.0
    %2591 = vmatprep.subr.mxu0 0.0
    %2592 = vmatpush1.msra.mxu0 0.0
    %2593 = vmatprep.subr.mxu0 0.0
    %2594 = vmatpush1.msra.mxu0 0.0
    %2595 = vmatprep.subr.mxu0 0.0
    %2596 = vmatpush1.msra.mxu0 0.0
    %2597 = vmatprep.subr.mxu0 0.0
    %2598 = vmatpush1.msra.mxu0 0.0
    %2599 = vmatprep.subr.mxu0 0.0
    %2600 = vmatpush1.msra.mxu0 0.0
    %2601 = vmatprep.subr.mxu0 0.0
    %2602 = vmatpush1.msra.mxu0 0.0
    %2603 = vmatprep.subr.mxu0 0.0
    %2604 = vmatpush1.msra.mxu0 0.0
    %2605 = vmatprep.mubr.f32.mxu0 0.0
    %2606 = vmatmul.mubr.f32.gmra.mrb[0].mxu0 %v2303
    %v2607 = vpop.f32.mrb[0].mxu0
    %v2608 = vadd.f32 0.0, %v2607
    %v2609 = vpop.f32.mrb[0].mxu0
    %2610 = vdwg.mxu0
    %v2611 = vadd.f32 %v2538, %v2608
    %v2612 = vtanh.pop %v2611
    %v2613 = vmul.f32 %v2612, 0.5
    %v2614 = vadd.f32 %v2613, 0.5
    %v2615 = vmul.f32 %v2614, %v2293
    %2617 = vrot.lane.b32.xlu0 %v2612, 64
    %v2618 = vpop.permute.xlu0 %2617
    %v2620 = vmul.f32 %v2614, %v2618
    %2622 = vrot.lane.b32.xlu0 %v2620, 32
    %v2623 = vpop.permute.xlu0 %2622
    %v2625 = vadd.f32 %v2615, %v2623
    %v2626 = vtanh.pop %v2625
    %2628 = vrot.lane.b32.xlu0 %v2626, 64
    %v2629 = vpop.permute.xlu0 %2628
    %v2631 = vmul.f32 %v2614, %v2629
    %2633 = vrot.lane.b32.xlu0 %v639, 64
    %v2634 = vpop.permute.xlu0 %2633
    %2636 = vrot.lane.b32.xlu0 %v971, 96
    %v2637 = vpop.permute.xlu0 %2636
    %2640 = vrot.lane.b32.xlu0 %v1967, 64
    %v2641 = vpop.permute.xlu0 %2640
    %2643 = vrot.lane.b32.xlu0 %v2299, 96
    %v2644 = vpop.permute.xlu0 %2643
    %v2646 = vsel %vm123, %v302, %v2634
    %vm2647 = vcmask 523264
    %v2648 = vsel %vm2647, %v2646, %v2637
    %vm2649 = vcmask 785408
    %v2650 = vsel %vm2649, %v2648, %v1303
    %v2651 = vsel %vm123, %v1638, %v2641
    %v2652 = vsel %vm2647, %v2651, %v2644
    %v2653 = vsel %vm2649, %v2652, %v2631
    %v2656 = vcombine.low %v2650, %v2653
    %v2658 = vunpack.c.l.s4 1983009808
    %v2659 = vunpack.c.0.s8 %v2658
    %v2660 = vlaneseq
    %v2661 = vshrl.u32 %v2660, 7
    %v2662 = vsub.s32 %v2659, %v2661
    %v2663 = vrot.slane %v2656, %v2662
    %2665 = vst [vmem:[%s7] sm:$0xf] %v2663
    // Predicated region
    $region50: #{generator_forward.1} parent=1 // pred_check
      _
    $region51: #{generator_forward.1} parent=1 // pred_check_branch
      %2667 = sbr.rel (0) target = $region53
    $region52: #{generator_forward.1} parent=1 // pred_region
      _
    $region53: #{generator_forward.1} parent=1 // pred_fallthru
      _
    // Predicated region
    $region54: #{generator_forward.1} parent=1 // pred_check
      _
    $region55: #{generator_forward.1} parent=1 // pred_check_branch
      %2669 = sbr.rel (0) target = $region57
    $region56: #{generator_forward.1} parent=1 // pred_region
      _
    $region57: #{generator_forward.1} parent=1 // pred_fallthru
      _
    %2670 = vsyncpa [#allocation3], 1
    %2671 = vsyncpa [#allocation5], 1
    %2672 = vsyncpa [#allocation8], 1

</llo_original>
